<compile_context>
chip_gen: v7x
topology: tpu7x:2x2x1
jax: 0.10.0
libtpu: 0.0.40
codegen_flags: <defaults>
</compile_context>

<pallas_src>
import jax
import jax.numpy as jnp
import numpy as np
from jax import lax
from jax.experimental import pallas as pl
from jax.experimental.pallas import tpu as pltpu


def m6_kernel(x_ref, m1_ref, b1_ref, wf_ref, bf_ref, w4_ref, b4_ref, o_ref):
    x = x_ref[...]                                                       # (TB, 128)
    # Conv1 (block-diagonal matmul) + bias, then Square1
    h = jnp.dot(x, m1_ref[...], preferred_element_type=jnp.float32,
                precision=lax.Precision.HIGHEST) + b1_ref[...]
    h = h * h
    # Fused Conv2 + FC1 (single (128,32) matmul) + fused bias, then Square2
    h = jnp.dot(h, wf_ref[...], preferred_element_type=jnp.float32,
                precision=lax.Precision.HIGHEST) + bf_ref[...]
    h = h * h
    # FC2 into an 8-wide padded output (cols 5..7 are zero); wrapper takes [:, :5]
    o = jnp.dot(h, w4_ref[...], preferred_element_type=jnp.float32,
                precision=lax.Precision.HIGHEST) + b4_ref[...]
    o_ref[...] = o.astype(o_ref.dtype)


def init_params(key):
    """Deterministic parameters with the shapes from M6.__init__ (PyTorch conv)."""
    ks = jax.random.split(key, 8)

    def u(k, shape, fan_in):
        bound = 1.0 / np.sqrt(fan_in)
        return jax.random.uniform(k, shape, jnp.float32, -bound, bound)

    w1 = u(ks[0], (2, 1, 2), 2)       # Conv1d(1, 2, k=2, s=2)
    b1 = u(ks[1], (2,), 2)
    w2 = u(ks[2], (4, 2, 2), 4)       # Conv1d(2, 4, k=2, s=2)
    b2 = u(ks[3], (4,), 4)
    wf1 = u(ks[4], (32, 128), 128)    # Linear(128, 32)
    bf1 = u(ks[5], (32,), 128)
    wf2 = u(ks[6], (5, 32), 32)       # Linear(32, 5)
    bf2 = u(ks[7], (5,), 32)
    return w1, b1, w2, b2, wf1, bf1, wf2, bf2


def pack_operands(params):
    """Lower the PyTorch parameters into the matmul operands used by the kernel."""
    w1, b1, w2, b2, wf1, bf1, wf2, bf2 = params
    w1n, w2n = np.asarray(w1), np.asarray(w2)

    # Conv1 as 4x4 block A: inner flat index m = 2k + oc (k = position in the
    # conv2 receptive window, oc = conv1 output channel).
    A = np.zeros((4, 4), np.float32)
    for k in range(2):
        for oc in range(2):
            for j in range(2):
                A[2 * k + j, 2 * k + oc] = w1n[oc, 0, j]
    M1 = np.kron(np.eye(32, dtype=np.float32), A)                        # (128, 128)
    bias1 = np.tile(np.array([b1[0], b1[1], b1[0], b1[1]], np.float32), 32)  # (128,)

    # Conv2 as 4x4 block: consumes m = 2k + ic, produces oc2.
    W2f = np.zeros((4, 4), np.float32)
    for k in range(2):
        for ic in range(2):
            for oc2 in range(4):
                W2f[2 * k + ic, oc2] = w2n[oc2, ic, k]
    M2 = np.kron(np.eye(32, dtype=np.float32), W2f)                      # (128, 128)
    bias2 = np.tile(np.asarray(b2, np.float32), 32)                      # (128,)

    # FC1: PyTorch flatten order is (oc2-major, s-minor); our flat order is
    # (s-major, oc2-minor) -> permute the FC1 weight columns accordingly.
    Wp = np.asarray(wf1).reshape(32, 4, 32).transpose(2, 1, 0).reshape(128, 32)

    # Fuse Conv2 into FC1: (h @ M2 + b2) @ Wp + bFC1 == h @ (M2 @ Wp) + (b2 @ Wp + bFC1)
    Wf = M2 @ Wp                                                         # (128, 32)
    bf = bias2[None, :] @ Wp + np.asarray(bf1)[None, :]                  # (1, 32)

    # FC2 zero-padded to 8 output columns (full last dim of the output array).
    W4p = np.zeros((32, 8), np.float32)
    W4p[:, :5] = np.asarray(wf2).T
    b4p = np.zeros((1, 8), np.float32)
    b4p[0, :5] = np.asarray(bf2)

    return (jnp.asarray(M1), jnp.asarray(bias1.reshape(1, 128)),
            jnp.asarray(Wf), jnp.asarray(bf),
            jnp.asarray(W4p), jnp.asarray(b4p))


def _round_up(x, m):
    return (x + m - 1) // m * m


@jax.jit
def m6_pallas(x, ops):
    M1, b1, Wf, bf, W4p, b4p = ops
    B = x.shape[0]
    x2d = x.reshape(B, 128)                       # squeeze channel dim (C=1), free

    # Batch tile: multiple of 8 sublanes, up to 2048 rows so per-grid-step
    # overhead is amortised, but capped at ceil(B/2) so there are >=2 tiles for
    # the two v7x TensorCores whenever B > 8.  Working set stays ~a few MiB
    # double-buffered -> inside every chip's scoped-VMEM default.
    TB = max(8, min(2048, _round_up(pl.cdiv(B, 2), 8)))
    grid = (pl.cdiv(B, TB),)
    # No host-side padding: the ragged last tile (and B % 8 != 0) is handled by
    # Pallas partial-block masking, so x is never copied in HBM before the call.

    const = lambda i: (0, 0)   # weights/biases resident across all batch tiles
    n_rows = grid[0] * TB
    flops = n_rows * (2 * (128 * 128 + 128 * 32 + 32 * 8) + 3 * 128 + 2 * 32 + 8)
    bytes_accessed = (B * (128 + 8) * 4
                      + (128 * 128 + 128 + 128 * 32 + 32 + 32 * 8 + 8) * 4)

    out = pl.pallas_call(
        m6_kernel,
        out_shape=jax.ShapeDtypeStruct((B, 8), jnp.float32),
        grid_spec=pltpu.PrefetchScalarGridSpec(
            num_scalar_prefetch=0,
            grid=grid,
            in_specs=[
                pl.BlockSpec((TB, 128), lambda i: (i, 0)),   # x tile
                pl.BlockSpec((128, 128), const),             # M1 (Conv1)
                pl.BlockSpec((1, 128), const),               # bias1
                pl.BlockSpec((128, 32), const),              # fused Conv2+FC1 weight
                pl.BlockSpec((1, 32), const),                # fused bias
                pl.BlockSpec((32, 8), const),                # FC2 weight (8-col pad)
                pl.BlockSpec((1, 8), const),                 # FC2 bias   (8-col pad)
            ],
            out_specs=pl.BlockSpec((TB, 8), lambda i: (i, 0)),
        ),
        compiler_params=pltpu.CompilerParams(
            dimension_semantics=("parallel",)),
        cost_estimate=pl.CostEstimate(flops=flops, transcendentals=0,
                                      bytes_accessed=bytes_accessed),
    )(x2d, M1, b1, Wf, bf, W4p, b4p)

    return out[:, :5]


def m6_ref(x, params):
    """Pure-JAX reference matching the PyTorch forward exactly."""
    w1, b1, w2, b2, wf1, bf1, wf2, bf2 = params
    B = x.shape[0]
    xp = x.reshape(B, 1, 64, 2)                                   # non-overlapping windows
    y = jnp.einsum('bitk,oik->bot', xp, w1) + b1[None, :, None]   # Conv1 -> (B, 2, 64)
    y = y ** 2
    yp = y.reshape(B, 2, 32, 2)
    y = jnp.einsum('bisk,oik->bos', yp, w2) + b2[None, :, None]   # Conv2 -> (B, 4, 32)
    flat = y.reshape(B, 128)                                      # torch.flatten(x, 1)
    h = flat @ wf1.T + bf1
    h = h ** 2
    return h @ wf2.T + bf2


if __name__ == "__main__":
    key = jax.random.PRNGKey(0)
    pkey, xkey = jax.random.split(key)

    params = init_params(pkey)
    ops = pack_operands(params)

    x = jax.random.normal(xkey, (2, 1, 128), jnp.float32)   # (B, C=1, L=128)

    out = m6_pallas(x, ops)
    jax.block_until_ready(out)

    ref = m6_ref(x, params)
    np.testing.assert_allclose(np.asarray(out), np.asarray(ref), rtol=2e-4, atol=2e-4)

    print("KERNEL_OK")
</pallas_src>

<mosaic_0001>
module attributes {stable_mosaic.version = 11 : i64} {
  func.func @m6_kernel(%arg0: i32, %arg1: memref<8x128xf32, #tpu.memory_space<vmem>>, %arg2: memref<128x128xf32, #tpu.memory_space<vmem>>, %arg3: memref<1x128xf32, #tpu.memory_space<vmem>>, %arg4: memref<128x32xf32, #tpu.memory_space<vmem>>, %arg5: memref<1x32xf32, #tpu.memory_space<vmem>>, %arg6: memref<32x8xf32, #tpu.memory_space<vmem>>, %arg7: memref<1x8xf32, #tpu.memory_space<vmem>>, %arg8: memref<8x8xf32, #tpu.memory_space<vmem>>) attributes {dimension_semantics = [#tpu.dimension_semantics<parallel>], iteration_bounds = array<i64: 1>, scalar_prefetch = 0 : i64, scratch_operands = 0 : i64, tpu.core_type = #tpu.core_type<tc>, window_params = [{transform_indices = @transform_0, window_bounds = array<i64: 8, 128>}, {pipeline_mode = #tpu.pipeline_mode<synchronous>, transform_indices = @transform_1, window_bounds = array<i64: 128, 128>}, {pipeline_mode = #tpu.pipeline_mode<synchronous>, transform_indices = @transform_2, window_bounds = array<i64: 1, 128>}, {pipeline_mode = #tpu.pipeline_mode<synchronous>, transform_indices = @transform_3, window_bounds = array<i64: 128, 32>}, {pipeline_mode = #tpu.pipeline_mode<synchronous>, transform_indices = @transform_4, window_bounds = array<i64: 1, 32>}, {pipeline_mode = #tpu.pipeline_mode<synchronous>, transform_indices = @transform_5, window_bounds = array<i64: 32, 8>}, {pipeline_mode = #tpu.pipeline_mode<synchronous>, transform_indices = @transform_6, window_bounds = array<i64: 1, 8>}, {transform_indices = @transform_7, window_bounds = array<i64: 8, 8>}]} {
    %c0 = arith.constant 0 : index
    %c0_0 = arith.constant 0 : index
    %0 = vector.load %arg1[%c0, %c0_0] : memref<8x128xf32, #tpu.memory_space<vmem>>, vector<8x128xf32>
    %c0_1 = arith.constant 0 : index
    %c0_2 = arith.constant 0 : index
    %1 = vector.load %arg2[%c0_1, %c0_2] : memref<128x128xf32, #tpu.memory_space<vmem>>, vector<128x128xf32>
    %cst = arith.constant dense<0.000000e+00> : vector<8x128xf32>
    %2 = tpu.matmul %0, %1, %cst {dimension_numbers = #tpu.dot_dimension_numbers<[1], [0], [0], [1], [0, 0, 1, 1], [], []>, precision = #tpu.contract_precision<fp32>} : vector<8x128xf32>, vector<128x128xf32>, vector<8x128xf32> -> vector<8x128xf32>
    %c0_3 = arith.constant 0 : index
    %c0_4 = arith.constant 0 : index
    %3 = vector.load %arg3[%c0_3, %c0_4] : memref<1x128xf32, #tpu.memory_space<vmem>>, vector<1x128xf32>
    %4 = vector.broadcast %3 : vector<1x128xf32> to vector<8x128xf32>
    %5 = arith.addf %2, %4 : vector<8x128xf32>
    %6 = arith.mulf %5, %5 : vector<8x128xf32>
    %c0_5 = arith.constant 0 : index
    %c0_6 = arith.constant 0 : index
    %7 = vector.load %arg4[%c0_5, %c0_6] : memref<128x32xf32, #tpu.memory_space<vmem>>, vector<128x32xf32>
    %cst_7 = arith.constant dense<0.000000e+00> : vector<8x32xf32>
    %8 = tpu.matmul %6, %7, %cst_7 {dimension_numbers = #tpu.dot_dimension_numbers<[1], [0], [0], [1], [0, 0, 1, 1], [], []>, precision = #tpu.contract_precision<fp32>} : vector<8x128xf32>, vector<128x32xf32>, vector<8x32xf32> -> vector<8x32xf32>
    %c0_8 = arith.constant 0 : index
    %c0_9 = arith.constant 0 : index
    %9 = vector.load %arg5[%c0_8, %c0_9] : memref<1x32xf32, #tpu.memory_space<vmem>>, vector<1x32xf32>
    %10 = vector.broadcast %9 : vector<1x32xf32> to vector<8x32xf32>
    %11 = arith.addf %8, %10 : vector<8x32xf32>
    %12 = arith.mulf %11, %11 : vector<8x32xf32>
    %c0_10 = arith.constant 0 : index
    %c0_11 = arith.constant 0 : index
    %13 = vector.load %arg6[%c0_10, %c0_11] : memref<32x8xf32, #tpu.memory_space<vmem>>, vector<32x8xf32>
    %cst_12 = arith.constant dense<0.000000e+00> : vector<8x8xf32>
    %14 = tpu.matmul %12, %13, %cst_12 {dimension_numbers = #tpu.dot_dimension_numbers<[1], [0], [0], [1], [0, 0, 1, 1], [], []>, precision = #tpu.contract_precision<fp32>} : vector<8x32xf32>, vector<32x8xf32>, vector<8x8xf32> -> vector<8x8xf32>
    %c0_13 = arith.constant 0 : index
    %c0_14 = arith.constant 0 : index
    %15 = vector.load %arg7[%c0_13, %c0_14] : memref<1x8xf32, #tpu.memory_space<vmem>>, vector<1x8xf32>
    %16 = vector.broadcast %15 : vector<1x8xf32> to vector<8x8xf32>
    %17 = arith.addf %14, %16 : vector<8x8xf32>
    %c0_15 = arith.constant 0 : index
    %c0_16 = arith.constant 0 : index
    %18 = vector.load %arg8[%c0_15, %c0_16] : memref<8x8xf32, #tpu.memory_space<vmem>>, vector<8x8xf32>
    tpu.vector_store %arg8[%c0_15, %c0_16], %17 {strides = array<i32>} : memref<8x8xf32, #tpu.memory_space<vmem>>, vector<8x8xf32>,
    return
  }
  func.func @transform_0(%arg0: i32) -> (i32, i32) {
    %c0_i32 = arith.constant 0 : i32
    %c0_i32_0 = arith.constant 0 : i32
    return %arg0, %c0_i32 : i32, i32
  }
  func.func @transform_1(%arg0: i32) -> (i32, i32) {
    %c0_i32 = arith.constant 0 : i32
    %c0_i32_0 = arith.constant 0 : i32
    %c0_i32_1 = arith.constant 0 : i32
    return %c0_i32, %c0_i32_0 : i32, i32
  }
  func.func @transform_2(%arg0: i32) -> (i32, i32) {
    %c0_i32 = arith.constant 0 : i32
    %c0_i32_0 = arith.constant 0 : i32
    %c0_i32_1 = arith.constant 0 : i32
    return %c0_i32, %c0_i32_0 : i32, i32
  }
  func.func @transform_3(%arg0: i32) -> (i32, i32) {
    %c0_i32 = arith.constant 0 : i32
    %c0_i32_0 = arith.constant 0 : i32
    %c0_i32_1 = arith.constant 0 : i32
    return %c0_i32, %c0_i32_0 : i32, i32
  }
  func.func @transform_4(%arg0: i32) -> (i32, i32) {
    %c0_i32 = arith.constant 0 : i32
    %c0_i32_0 = arith.constant 0 : i32
    %c0_i32_1 = arith.constant 0 : i32
    return %c0_i32, %c0_i32_0 : i32, i32
  }
  func.func @transform_5(%arg0: i32) -> (i32, i32) {
    %c0_i32 = arith.constant 0 : i32
    %c0_i32_0 = arith.constant 0 : i32
    %c0_i32_1 = arith.constant 0 : i32
    return %c0_i32, %c0_i32_0 : i32, i32
  }
  func.func @transform_6(%arg0: i32) -> (i32, i32) {
    %c0_i32 = arith.constant 0 : i32
    %c0_i32_0 = arith.constant 0 : i32
    %c0_i32_1 = arith.constant 0 : i32
    return %c0_i32, %c0_i32_0 : i32, i32
  }
  func.func @transform_7(%arg0: i32) -> (i32, i32) {
    %c0_i32 = arith.constant 0 : i32
    %c0_i32_0 = arith.constant 0 : i32
    return %arg0, %c0_i32 : i32, i32
  }
}

</mosaic_0001>

<llo_original>
// kernel: m6_pallas.1
$region0: #{m6_pallas.1}
  #allocation0 [shape = 'u32[]', space=smem, size = 0x4, offset = 0x4, fixed_abs, tag = 'smem constant byte address 0x4 - core index']
  #allocation1 [shape = 'u32[144,128]{1,0:T(1,128)}', space=vmem, size = 0x12000, scoped, tag = 'internal scratch']
  %s0 = inlined_call_operand.vmem [shape: f32[2,128], index: 0, kind: input, shape index: {}]
  %s1 = inlined_call_operand.vmem [shape: f32[128,128], index: 1, kind: input, shape index: {}]
  %s2 = inlined_call_operand.vmem [shape: f32[1,128], index: 2, kind: input, shape index: {}]
  %s3 = inlined_call_operand.vmem [shape: f32[128,32], index: 3, kind: input, shape index: {}]
  %s4 = inlined_call_operand.vmem [shape: f32[1,32], index: 4, kind: input, shape index: {}]
  %s5 = inlined_call_operand.vmem [shape: f32[32,8], index: 5, kind: input, shape index: {}]
  %s6 = inlined_call_operand.vmem [shape: f32[1,8], index: 6, kind: input, shape index: {}]
  %s7 = inlined_call_operand.hbm [shape: f32[2,8], index: 7, kind: output, shape index: {}]
  %s8 = sld [smem:[#allocation0]]
  $region38: #{m6_pallas.1} parent=0
    _
  %s10 = ssub.s32 1, %s8
  %s11 = scalar_select 0, %s10, %s8
  $region1: #{m6_pallas.1} parent=0
    #allocation2 [shape = 'u8[4096]{0}', space=vmem, size = 0x1000, scoped, tag = 'output window, operand 0, single buffered']
    #allocation3 [shape = 's32[1]{0}', space=sflag, size = 0x4, scoped, tag = 'scoped memory for m6_pallas.1']
    %12 = vsyncpa [#allocation3], 0
    // Predicated region
    $region2: #{m6_pallas.1} parent=1 // pred_check
      _
    $region3: #{m6_pallas.1} parent=1 // pred_check_branch
      %14 = sbr.rel (0) target = $region5
    $region4: #{m6_pallas.1} parent=1 // pred_region
      _
    $region5: #{m6_pallas.1} parent=1 // pred_fallthru
      _
    // Predicated region
    $region6: #{m6_pallas.1} parent=1 // pred_check
      _
    $region7: #{m6_pallas.1} parent=1 // pred_check_branch
      %16 = sbr.rel (0) target = $region9
    $region8: #{m6_pallas.1} parent=1 // pred_region
      _
    $region9: #{m6_pallas.1} parent=1 // pred_fallthru
      _
    // Predicated region
    $region10: #{m6_pallas.1} parent=1 // pred_check
      _
    $region11: #{m6_pallas.1} parent=1 // pred_check_branch
      %18 = sbr.rel (0) target = $region13
    $region12: #{m6_pallas.1} parent=1 // pred_region
      _
    $region13: #{m6_pallas.1} parent=1 // pred_fallthru
      _
    // Predicated region
    $region14: #{m6_pallas.1} parent=1 // pred_check
      _
    $region15: #{m6_pallas.1} parent=1 // pred_check_branch
      %20 = sbr.rel (0) target = $region17
    $region16: #{m6_pallas.1} parent=1 // pred_region
      _
    $region17: #{m6_pallas.1} parent=1 // pred_fallthru
      _
    // Predicated region
    $region18: #{m6_pallas.1} parent=1 // pred_check
      _
    $region19: #{m6_pallas.1} parent=1 // pred_check_branch
      %22 = sbr.rel (0) target = $region21
    $region20: #{m6_pallas.1} parent=1 // pred_region
      _
    $region21: #{m6_pallas.1} parent=1 // pred_fallthru
      _
    // Predicated region
    $region22: #{m6_pallas.1} parent=1 // pred_check
      _
    $region23: #{m6_pallas.1} parent=1 // pred_check_branch
      %24 = sbr.rel (0) target = $region25
    $region24: #{m6_pallas.1} parent=1 // pred_region
      _
    $region25: #{m6_pallas.1} parent=1 // pred_fallthru
      _
    // Predicated region
    $region26: #{m6_pallas.1} parent=1 // pred_check
      _
    $region27: #{m6_pallas.1} parent=1 // pred_check_branch
      %26 = sbr.rel (0) target = $region29
    $region28: #{m6_pallas.1} parent=1 // pred_region
      _
    $region29: #{m6_pallas.1} parent=1 // pred_fallthru
      _
    %v27 = vld [vmem:[%s0] sm:$0xff]
    %v28 = vld [vmem:[%s1] sm:$0xff]
    %v29 = vld [vmem:[%s1 + $0x8] sm:$0xff]
    %v30 = vld [vmem:[%s1 + $0x10] sm:$0xff]
    %v31 = vld [vmem:[%s1 + $0x18] sm:$0xff]
    %v32 = vld [vmem:[%s1 + $0x20] sm:$0xff]
    %v33 = vld [vmem:[%s1 + $0x28] sm:$0xff]
    %v34 = vld [vmem:[%s1 + $0x30] sm:$0xff]
    %v35 = vld [vmem:[%s1 + $0x38] sm:$0xff]
    %v36 = vld [vmem:[%s1 + $0x40] sm:$0xff]
    %v37 = vld [vmem:[%s1 + $0x48] sm:$0xff]
    %v38 = vld [vmem:[%s1 + $0x50] sm:$0xff]
    %v39 = vld [vmem:[%s1 + $0x58] sm:$0xff]
    %v40 = vld [vmem:[%s1 + $0x60] sm:$0xff]
    %v41 = vld [vmem:[%s1 + $0x68] sm:$0xff]
    %v42 = vld [vmem:[%s1 + $0x70] sm:$0xff]
    %v43 = vld [vmem:[%s1 + $0x78] sm:$0xff]
    %v44 = vld [vmem:[%s2] sm:$0x1]
    %v46 = vlaneseq
    %v47 = vshrl.u32 %v46, 7
    %v48 = vsub.s32 0, %v47
    %v49 = vrot.slane %v44, %v48
    %51 = vmatprep.subr.mxu0 0.0
    %v52 = vand.u32 %v28, 4294901760
    %53 = vmatpush1.msra.mxu0 %v52
    %54 = vmatprep.subr.mxu0 0.0
    %v55 = vand.u32 %v29, 4294901760
    %56 = vmatpush1.msra.mxu0 %v55
    %57 = vmatprep.subr.mxu0 0.0
    %v58 = vand.u32 %v30, 4294901760
    %59 = vmatpush1.msra.mxu0 %v58
    %60 = vmatprep.subr.mxu0 0.0
    %v61 = vand.u32 %v31, 4294901760
    %62 = vmatpush1.msra.mxu0 %v61
    %63 = vmatprep.subr.mxu0 0.0
    %v64 = vand.u32 %v32, 4294901760
    %65 = vmatpush1.msra.mxu0 %v64
    %66 = vmatprep.subr.mxu0 0.0
    %v67 = vand.u32 %v33, 4294901760
    %68 = vmatpush1.msra.mxu0 %v67
    %69 = vmatprep.subr.mxu0 0.0
    %v70 = vand.u32 %v34, 4294901760
    %71 = vmatpush1.msra.mxu0 %v70
    %72 = vmatprep.subr.mxu0 0.0
    %v73 = vand.u32 %v35, 4294901760
    %74 = vmatpush1.msra.mxu0 %v73
    %75 = vmatprep.subr.mxu0 0.0
    %v76 = vand.u32 %v36, 4294901760
    %77 = vmatpush1.msra.mxu0 %v76
    %78 = vmatprep.subr.mxu0 0.0
    %v79 = vand.u32 %v37, 4294901760
    %80 = vmatpush1.msra.mxu0 %v79
    %81 = vmatprep.subr.mxu0 0.0
    %v82 = vand.u32 %v38, 4294901760
    %83 = vmatpush1.msra.mxu0 %v82
    %84 = vmatprep.subr.mxu0 0.0
    %v85 = vand.u32 %v39, 4294901760
    %86 = vmatpush1.msra.mxu0 %v85
    %87 = vmatprep.subr.mxu0 0.0
    %v88 = vand.u32 %v40, 4294901760
    %89 = vmatpush1.msra.mxu0 %v88
    %90 = vmatprep.subr.mxu0 0.0
    %v91 = vand.u32 %v41, 4294901760
    %92 = vmatpush1.msra.mxu0 %v91
    %93 = vmatprep.subr.mxu0 0.0
    %v94 = vand.u32 %v42, 4294901760
    %95 = vmatpush1.msra.mxu0 %v94
    %96 = vmatprep.subr.mxu0 0.0
    %v97 = vand.u32 %v43, 4294901760
    %98 = vmatpush1.msra.mxu0 %v97
    %99 = vmatprep.subr.mxu0 0.0
    %100 = vmatpush1.msra.mxu0 0.0
    %101 = vmatprep.subr.mxu0 0.0
    %102 = vmatpush1.msra.mxu0 0.0
    %103 = vmatprep.subr.mxu0 0.0
    %104 = vmatpush1.msra.mxu0 0.0
    %105 = vmatprep.subr.mxu0 0.0
    %106 = vmatpush1.msra.mxu0 0.0
    %107 = vmatprep.subr.mxu0 0.0
    %108 = vmatpush1.msra.mxu0 0.0
    %109 = vmatprep.subr.mxu0 0.0
    %110 = vmatpush1.msra.mxu0 0.0
    %111 = vmatprep.subr.mxu0 0.0
    %112 = vmatpush1.msra.mxu0 0.0
    %113 = vmatprep.subr.mxu0 0.0
    %114 = vmatpush1.msra.mxu0 0.0
    %115 = vmatprep.subr.mxu0 0.0
    %116 = vmatpush1.msra.mxu0 0.0
    %117 = vmatprep.subr.mxu0 0.0
    %118 = vmatpush1.msra.mxu0 0.0
    %119 = vmatprep.subr.mxu0 0.0
    %120 = vmatpush1.msra.mxu0 0.0
    %121 = vmatprep.subr.mxu0 0.0
    %122 = vmatpush1.msra.mxu0 0.0
    %123 = vmatprep.subr.mxu0 0.0
    %124 = vmatpush1.msra.mxu0 0.0
    %125 = vmatprep.subr.mxu0 0.0
    %126 = vmatpush1.msra.mxu0 0.0
    %127 = vmatprep.subr.mxu0 0.0
    %128 = vmatpush1.msra.mxu0 0.0
    %129 = vmatprep.subr.mxu0 0.0
    %130 = vmatpush1.msra.mxu0 0.0
    %131 = vmatprep.mubr.f32.mxu0 0.0
    %v132 = vand.u32 %v27, 4294901760
    %v133 = vsub.f32 %v27, %v132
    %v134 = vand.u32 %v133, 4294901760
    %v135 = vsub.f32 %v133, %v134
    %v136 = vand.u32 %v135, 4294901760
    %137 = vmatmul.mubr.f32.gmra.mrb[0].mxu0 %v136
    %v138 = vpop.f32.mrb[0].mxu0
    %v139 = vadd.f32 %v49, %v138
    %v140 = vpop.f32.mrb[0].mxu0
    %141 = vdwg.mxu0
    %142 = vmatprep.subr.mxu0 0.0
    %v143 = vand.u32 %v28, 4294901760
    %v144 = vsub.f32 %v28, %v143
    %v145 = vand.u32 %v144, 4294901760
    %v146 = vsub.f32 %v144, %v145
    %v147 = vand.u32 %v146, 4294901760
    %148 = vmatpush1.msra.mxu0 %v147
    %149 = vmatprep.subr.mxu0 0.0
    %v150 = vand.u32 %v29, 4294901760
    %v151 = vsub.f32 %v29, %v150
    %v152 = vand.u32 %v151, 4294901760
    %v153 = vsub.f32 %v151, %v152
    %v154 = vand.u32 %v153, 4294901760
    %155 = vmatpush1.msra.mxu0 %v154
    %156 = vmatprep.subr.mxu0 0.0
    %v157 = vand.u32 %v30, 4294901760
    %v158 = vsub.f32 %v30, %v157
    %v159 = vand.u32 %v158, 4294901760
    %v160 = vsub.f32 %v158, %v159
    %v161 = vand.u32 %v160, 4294901760
    %162 = vmatpush1.msra.mxu0 %v161
    %163 = vmatprep.subr.mxu0 0.0
    %v164 = vand.u32 %v31, 4294901760
    %v165 = vsub.f32 %v31, %v164
    %v166 = vand.u32 %v165, 4294901760
    %v167 = vsub.f32 %v165, %v166
    %v168 = vand.u32 %v167, 4294901760
    %169 = vmatpush1.msra.mxu0 %v168
    %170 = vmatprep.subr.mxu0 0.0
    %v171 = vand.u32 %v32, 4294901760
    %v172 = vsub.f32 %v32, %v171
    %v173 = vand.u32 %v172, 4294901760
    %v174 = vsub.f32 %v172, %v173
    %v175 = vand.u32 %v174, 4294901760
    %176 = vmatpush1.msra.mxu0 %v175
    %177 = vmatprep.subr.mxu0 0.0
    %v178 = vand.u32 %v33, 4294901760
    %v179 = vsub.f32 %v33, %v178
    %v180 = vand.u32 %v179, 4294901760
    %v181 = vsub.f32 %v179, %v180
    %v182 = vand.u32 %v181, 4294901760
    %183 = vmatpush1.msra.mxu0 %v182
    %184 = vmatprep.subr.mxu0 0.0
    %v185 = vand.u32 %v34, 4294901760
    %v186 = vsub.f32 %v34, %v185
    %v187 = vand.u32 %v186, 4294901760
    %v188 = vsub.f32 %v186, %v187
    %v189 = vand.u32 %v188, 4294901760
    %190 = vmatpush1.msra.mxu0 %v189
    %191 = vmatprep.subr.mxu0 0.0
    %v192 = vand.u32 %v35, 4294901760
    %v193 = vsub.f32 %v35, %v192
    %v194 = vand.u32 %v193, 4294901760
    %v195 = vsub.f32 %v193, %v194
    %v196 = vand.u32 %v195, 4294901760
    %197 = vmatpush1.msra.mxu0 %v196
    %198 = vmatprep.subr.mxu0 0.0
    %v199 = vand.u32 %v36, 4294901760
    %v200 = vsub.f32 %v36, %v199
    %v201 = vand.u32 %v200, 4294901760
    %v202 = vsub.f32 %v200, %v201
    %v203 = vand.u32 %v202, 4294901760
    %204 = vmatpush1.msra.mxu0 %v203
    %205 = vmatprep.subr.mxu0 0.0
    %v206 = vand.u32 %v37, 4294901760
    %v207 = vsub.f32 %v37, %v206
    %v208 = vand.u32 %v207, 4294901760
    %v209 = vsub.f32 %v207, %v208
    %v210 = vand.u32 %v209, 4294901760
    %211 = vmatpush1.msra.mxu0 %v210
    %212 = vmatprep.subr.mxu0 0.0
    %v213 = vand.u32 %v38, 4294901760
    %v214 = vsub.f32 %v38, %v213
    %v215 = vand.u32 %v214, 4294901760
    %v216 = vsub.f32 %v214, %v215
    %v217 = vand.u32 %v216, 4294901760
    %218 = vmatpush1.msra.mxu0 %v217
    %219 = vmatprep.subr.mxu0 0.0
    %v220 = vand.u32 %v39, 4294901760
    %v221 = vsub.f32 %v39, %v220
    %v222 = vand.u32 %v221, 4294901760
    %v223 = vsub.f32 %v221, %v222
    %v224 = vand.u32 %v223, 4294901760
    %225 = vmatpush1.msra.mxu0 %v224
    %226 = vmatprep.subr.mxu0 0.0
    %v227 = vand.u32 %v40, 4294901760
    %v228 = vsub.f32 %v40, %v227
    %v229 = vand.u32 %v228, 4294901760
    %v230 = vsub.f32 %v228, %v229
    %v231 = vand.u32 %v230, 4294901760
    %232 = vmatpush1.msra.mxu0 %v231
    %233 = vmatprep.subr.mxu0 0.0
    %v234 = vand.u32 %v41, 4294901760
    %v235 = vsub.f32 %v41, %v234
    %v236 = vand.u32 %v235, 4294901760
    %v237 = vsub.f32 %v235, %v236
    %v238 = vand.u32 %v237, 4294901760
    %239 = vmatpush1.msra.mxu0 %v238
    %240 = vmatprep.subr.mxu0 0.0
    %v241 = vand.u32 %v42, 4294901760
    %v242 = vsub.f32 %v42, %v241
    %v243 = vand.u32 %v242, 4294901760
    %v244 = vsub.f32 %v242, %v243
    %v245 = vand.u32 %v244, 4294901760
    %246 = vmatpush1.msra.mxu0 %v245
    %247 = vmatprep.subr.mxu0 0.0
    %v248 = vand.u32 %v43, 4294901760
    %v249 = vsub.f32 %v43, %v248
    %v250 = vand.u32 %v249, 4294901760
    %v251 = vsub.f32 %v249, %v250
    %v252 = vand.u32 %v251, 4294901760
    %253 = vmatpush1.msra.mxu0 %v252
    %254 = vmatprep.subr.mxu0 0.0
    %255 = vmatpush1.msra.mxu0 0.0
    %256 = vmatprep.subr.mxu0 0.0
    %257 = vmatpush1.msra.mxu0 0.0
    %258 = vmatprep.subr.mxu0 0.0
    %259 = vmatpush1.msra.mxu0 0.0
    %260 = vmatprep.subr.mxu0 0.0
    %261 = vmatpush1.msra.mxu0 0.0
    %262 = vmatprep.subr.mxu0 0.0
    %263 = vmatpush1.msra.mxu0 0.0
    %264 = vmatprep.subr.mxu0 0.0
    %265 = vmatpush1.msra.mxu0 0.0
    %266 = vmatprep.subr.mxu0 0.0
    %267 = vmatpush1.msra.mxu0 0.0
    %268 = vmatprep.subr.mxu0 0.0
    %269 = vmatpush1.msra.mxu0 0.0
    %270 = vmatprep.subr.mxu0 0.0
    %271 = vmatpush1.msra.mxu0 0.0
    %272 = vmatprep.subr.mxu0 0.0
    %273 = vmatpush1.msra.mxu0 0.0
    %274 = vmatprep.subr.mxu0 0.0
    %275 = vmatpush1.msra.mxu0 0.0
    %276 = vmatprep.subr.mxu0 0.0
    %277 = vmatpush1.msra.mxu0 0.0
    %278 = vmatprep.subr.mxu0 0.0
    %279 = vmatpush1.msra.mxu0 0.0
    %280 = vmatprep.subr.mxu0 0.0
    %281 = vmatpush1.msra.mxu0 0.0
    %282 = vmatprep.subr.mxu0 0.0
    %283 = vmatpush1.msra.mxu0 0.0
    %284 = vmatprep.subr.mxu0 0.0
    %285 = vmatpush1.msra.mxu0 0.0
    %286 = vmatprep.mubr.f32.mxu0 0.0
    %v287 = vand.u32 %v27, 4294901760
    %288 = vmatmul.mubr.f32.gmra.mrb[0].mxu0 %v287
    %v289 = vpop.f32.mrb[0].mxu0
    %v290 = vadd.f32 %v139, %v289
    %v291 = vpop.f32.mrb[0].mxu0
    %292 = vdwg.mxu0
    %293 = vmatprep.subr.mxu0 0.0
    %v294 = vand.u32 %v28, 4294901760
    %v295 = vsub.f32 %v28, %v294
    %296 = vmatpush1.msra.mxu0 %v295
    %297 = vmatprep.subr.mxu0 0.0
    %v298 = vand.u32 %v29, 4294901760
    %v299 = vsub.f32 %v29, %v298
    %300 = vmatpush1.msra.mxu0 %v299
    %301 = vmatprep.subr.mxu0 0.0
    %v302 = vand.u32 %v30, 4294901760
    %v303 = vsub.f32 %v30, %v302
    %304 = vmatpush1.msra.mxu0 %v303
    %305 = vmatprep.subr.mxu0 0.0
    %v306 = vand.u32 %v31, 4294901760
    %v307 = vsub.f32 %v31, %v306
    %308 = vmatpush1.msra.mxu0 %v307
    %309 = vmatprep.subr.mxu0 0.0
    %v310 = vand.u32 %v32, 4294901760
    %v311 = vsub.f32 %v32, %v310
    %312 = vmatpush1.msra.mxu0 %v311
    %313 = vmatprep.subr.mxu0 0.0
    %v314 = vand.u32 %v33, 4294901760
    %v315 = vsub.f32 %v33, %v314
    %316 = vmatpush1.msra.mxu0 %v315
    %317 = vmatprep.subr.mxu0 0.0
    %v318 = vand.u32 %v34, 4294901760
    %v319 = vsub.f32 %v34, %v318
    %320 = vmatpush1.msra.mxu0 %v319
    %321 = vmatprep.subr.mxu0 0.0
    %v322 = vand.u32 %v35, 4294901760
    %v323 = vsub.f32 %v35, %v322
    %324 = vmatpush1.msra.mxu0 %v323
    %325 = vmatprep.subr.mxu0 0.0
    %v326 = vand.u32 %v36, 4294901760
    %v327 = vsub.f32 %v36, %v326
    %328 = vmatpush1.msra.mxu0 %v327
    %329 = vmatprep.subr.mxu0 0.0
    %v330 = vand.u32 %v37, 4294901760
    %v331 = vsub.f32 %v37, %v330
    %332 = vmatpush1.msra.mxu0 %v331
    %333 = vmatprep.subr.mxu0 0.0
    %v334 = vand.u32 %v38, 4294901760
    %v335 = vsub.f32 %v38, %v334
    %336 = vmatpush1.msra.mxu0 %v335
    %337 = vmatprep.subr.mxu0 0.0
    %v338 = vand.u32 %v39, 4294901760
    %v339 = vsub.f32 %v39, %v338
    %340 = vmatpush1.msra.mxu0 %v339
    %341 = vmatprep.subr.mxu0 0.0
    %v342 = vand.u32 %v40, 4294901760
    %v343 = vsub.f32 %v40, %v342
    %344 = vmatpush1.msra.mxu0 %v343
    %345 = vmatprep.subr.mxu0 0.0
    %v346 = vand.u32 %v41, 4294901760
    %v347 = vsub.f32 %v41, %v346
    %348 = vmatpush1.msra.mxu0 %v347
    %349 = vmatprep.subr.mxu0 0.0
    %v350 = vand.u32 %v42, 4294901760
    %v351 = vsub.f32 %v42, %v350
    %352 = vmatpush1.msra.mxu0 %v351
    %353 = vmatprep.subr.mxu0 0.0
    %v354 = vand.u32 %v43, 4294901760
    %v355 = vsub.f32 %v43, %v354
    %356 = vmatpush1.msra.mxu0 %v355
    %357 = vmatprep.subr.mxu0 0.0
    %358 = vmatpush1.msra.mxu0 0.0
    %359 = vmatprep.subr.mxu0 0.0
    %360 = vmatpush1.msra.mxu0 0.0
    %361 = vmatprep.subr.mxu0 0.0
    %362 = vmatpush1.msra.mxu0 0.0
    %363 = vmatprep.subr.mxu0 0.0
    %364 = vmatpush1.msra.mxu0 0.0
    %365 = vmatprep.subr.mxu0 0.0
    %366 = vmatpush1.msra.mxu0 0.0
    %367 = vmatprep.subr.mxu0 0.0
    %368 = vmatpush1.msra.mxu0 0.0
    %369 = vmatprep.subr.mxu0 0.0
    %370 = vmatpush1.msra.mxu0 0.0
    %371 = vmatprep.subr.mxu0 0.0
    %372 = vmatpush1.msra.mxu0 0.0
    %373 = vmatprep.subr.mxu0 0.0
    %374 = vmatpush1.msra.mxu0 0.0
    %375 = vmatprep.subr.mxu0 0.0
    %376 = vmatpush1.msra.mxu0 0.0
    %377 = vmatprep.subr.mxu0 0.0
    %378 = vmatpush1.msra.mxu0 0.0
    %379 = vmatprep.subr.mxu0 0.0
    %380 = vmatpush1.msra.mxu0 0.0
    %381 = vmatprep.subr.mxu0 0.0
    %382 = vmatpush1.msra.mxu0 0.0
    %383 = vmatprep.subr.mxu0 0.0
    %384 = vmatpush1.msra.mxu0 0.0
    %385 = vmatprep.subr.mxu0 0.0
    %386 = vmatpush1.msra.mxu0 0.0
    %387 = vmatprep.subr.mxu0 0.0
    %388 = vmatpush1.msra.mxu0 0.0
    %389 = vmatprep.mubr.f32.mxu0 0.0
    %v390 = vand.u32 %v27, 4294901760
    %v391 = vsub.f32 %v27, %v390
    %392 = vmatmul.mubr.f32.gmra.mrb[0].mxu0 %v391
    %v393 = vpop.f32.mrb[0].mxu0
    %v394 = vadd.f32 %v290, %v393
    %v395 = vpop.f32.mrb[0].mxu0
    %396 = vdwg.mxu0
    %397 = vmatprep.subr.mxu0 0.0
    %v398 = vand.u32 %v28, 4294901760
    %399 = vmatpush1.msra.mxu0 %v398
    %400 = vmatprep.subr.mxu0 0.0
    %v401 = vand.u32 %v29, 4294901760
    %402 = vmatpush1.msra.mxu0 %v401
    %403 = vmatprep.subr.mxu0 0.0
    %v404 = vand.u32 %v30, 4294901760
    %405 = vmatpush1.msra.mxu0 %v404
    %406 = vmatprep.subr.mxu0 0.0
    %v407 = vand.u32 %v31, 4294901760
    %408 = vmatpush1.msra.mxu0 %v407
    %409 = vmatprep.subr.mxu0 0.0
    %v410 = vand.u32 %v32, 4294901760
    %411 = vmatpush1.msra.mxu0 %v410
    %412 = vmatprep.subr.mxu0 0.0
    %v413 = vand.u32 %v33, 4294901760
    %414 = vmatpush1.msra.mxu0 %v413
    %415 = vmatprep.subr.mxu0 0.0
    %v416 = vand.u32 %v34, 4294901760
    %417 = vmatpush1.msra.mxu0 %v416
    %418 = vmatprep.subr.mxu0 0.0
    %v419 = vand.u32 %v35, 4294901760
    %420 = vmatpush1.msra.mxu0 %v419
    %421 = vmatprep.subr.mxu0 0.0
    %v422 = vand.u32 %v36, 4294901760
    %423 = vmatpush1.msra.mxu0 %v422
    %424 = vmatprep.subr.mxu0 0.0
    %v425 = vand.u32 %v37, 4294901760
    %426 = vmatpush1.msra.mxu0 %v425
    %427 = vmatprep.subr.mxu0 0.0
    %v428 = vand.u32 %v38, 4294901760
    %429 = vmatpush1.msra.mxu0 %v428
    %430 = vmatprep.subr.mxu0 0.0
    %v431 = vand.u32 %v39, 4294901760
    %432 = vmatpush1.msra.mxu0 %v431
    %433 = vmatprep.subr.mxu0 0.0
    %v434 = vand.u32 %v40, 4294901760
    %435 = vmatpush1.msra.mxu0 %v434
    %436 = vmatprep.subr.mxu0 0.0
    %v437 = vand.u32 %v41, 4294901760
    %438 = vmatpush1.msra.mxu0 %v437
    %439 = vmatprep.subr.mxu0 0.0
    %v440 = vand.u32 %v42, 4294901760
    %441 = vmatpush1.msra.mxu0 %v440
    %442 = vmatprep.subr.mxu0 0.0
    %v443 = vand.u32 %v43, 4294901760
    %444 = vmatpush1.msra.mxu0 %v443
    %445 = vmatprep.subr.mxu0 0.0
    %446 = vmatpush1.msra.mxu0 0.0
    %447 = vmatprep.subr.mxu0 0.0
    %448 = vmatpush1.msra.mxu0 0.0
    %449 = vmatprep.subr.mxu0 0.0
    %450 = vmatpush1.msra.mxu0 0.0
    %451 = vmatprep.subr.mxu0 0.0
    %452 = vmatpush1.msra.mxu0 0.0
    %453 = vmatprep.subr.mxu0 0.0
    %454 = vmatpush1.msra.mxu0 0.0
    %455 = vmatprep.subr.mxu0 0.0
    %456 = vmatpush1.msra.mxu0 0.0
    %457 = vmatprep.subr.mxu0 0.0
    %458 = vmatpush1.msra.mxu0 0.0
    %459 = vmatprep.subr.mxu0 0.0
    %460 = vmatpush1.msra.mxu0 0.0
    %461 = vmatprep.subr.mxu0 0.0
    %462 = vmatpush1.msra.mxu0 0.0
    %463 = vmatprep.subr.mxu0 0.0
    %464 = vmatpush1.msra.mxu0 0.0
    %465 = vmatprep.subr.mxu0 0.0
    %466 = vmatpush1.msra.mxu0 0.0
    %467 = vmatprep.subr.mxu0 0.0
    %468 = vmatpush1.msra.mxu0 0.0
    %469 = vmatprep.subr.mxu0 0.0
    %470 = vmatpush1.msra.mxu0 0.0
    %471 = vmatprep.subr.mxu0 0.0
    %472 = vmatpush1.msra.mxu0 0.0
    %473 = vmatprep.subr.mxu0 0.0
    %474 = vmatpush1.msra.mxu0 0.0
    %475 = vmatprep.subr.mxu0 0.0
    %476 = vmatpush1.msra.mxu0 0.0
    %477 = vmatprep.mubr.f32.mxu0 0.0
    %v478 = vand.u32 %v27, 4294901760
    %v479 = vsub.f32 %v27, %v478
    %v480 = vand.u32 %v479, 4294901760
    %481 = vmatmul.mubr.f32.gmra.mrb[0].mxu0 %v480
    %v482 = vpop.f32.mrb[0].mxu0
    %v483 = vadd.f32 %v394, %v482
    %v484 = vpop.f32.mrb[0].mxu0
    %485 = vdwg.mxu0
    %486 = vmatprep.subr.mxu0 0.0
    %v487 = vand.u32 %v28, 4294901760
    %v488 = vsub.f32 %v28, %v487
    %v489 = vand.u32 %v488, 4294901760
    %490 = vmatpush1.msra.mxu0 %v489
    %491 = vmatprep.subr.mxu0 0.0
    %v492 = vand.u32 %v29, 4294901760
    %v493 = vsub.f32 %v29, %v492
    %v494 = vand.u32 %v493, 4294901760
    %495 = vmatpush1.msra.mxu0 %v494
    %496 = vmatprep.subr.mxu0 0.0
    %v497 = vand.u32 %v30, 4294901760
    %v498 = vsub.f32 %v30, %v497
    %v499 = vand.u32 %v498, 4294901760
    %500 = vmatpush1.msra.mxu0 %v499
    %501 = vmatprep.subr.mxu0 0.0
    %v502 = vand.u32 %v31, 4294901760
    %v503 = vsub.f32 %v31, %v502
    %v504 = vand.u32 %v503, 4294901760
    %505 = vmatpush1.msra.mxu0 %v504
    %506 = vmatprep.subr.mxu0 0.0
    %v507 = vand.u32 %v32, 4294901760
    %v508 = vsub.f32 %v32, %v507
    %v509 = vand.u32 %v508, 4294901760
    %510 = vmatpush1.msra.mxu0 %v509
    %511 = vmatprep.subr.mxu0 0.0
    %v512 = vand.u32 %v33, 4294901760
    %v513 = vsub.f32 %v33, %v512
    %v514 = vand.u32 %v513, 4294901760
    %515 = vmatpush1.msra.mxu0 %v514
    %516 = vmatprep.subr.mxu0 0.0
    %v517 = vand.u32 %v34, 4294901760
    %v518 = vsub.f32 %v34, %v517
    %v519 = vand.u32 %v518, 4294901760
    %520 = vmatpush1.msra.mxu0 %v519
    %521 = vmatprep.subr.mxu0 0.0
    %v522 = vand.u32 %v35, 4294901760
    %v523 = vsub.f32 %v35, %v522
    %v524 = vand.u32 %v523, 4294901760
    %525 = vmatpush1.msra.mxu0 %v524
    %526 = vmatprep.subr.mxu0 0.0
    %v527 = vand.u32 %v36, 4294901760
    %v528 = vsub.f32 %v36, %v527
    %v529 = vand.u32 %v528, 4294901760
    %530 = vmatpush1.msra.mxu0 %v529
    %531 = vmatprep.subr.mxu0 0.0
    %v532 = vand.u32 %v37, 4294901760
    %v533 = vsub.f32 %v37, %v532
    %v534 = vand.u32 %v533, 4294901760
    %535 = vmatpush1.msra.mxu0 %v534
    %536 = vmatprep.subr.mxu0 0.0
    %v537 = vand.u32 %v38, 4294901760
    %v538 = vsub.f32 %v38, %v537
    %v539 = vand.u32 %v538, 4294901760
    %540 = vmatpush1.msra.mxu0 %v539
    %541 = vmatprep.subr.mxu0 0.0
    %v542 = vand.u32 %v39, 4294901760
    %v543 = vsub.f32 %v39, %v542
    %v544 = vand.u32 %v543, 4294901760
    %545 = vmatpush1.msra.mxu0 %v544
    %546 = vmatprep.subr.mxu0 0.0
    %v547 = vand.u32 %v40, 4294901760
    %v548 = vsub.f32 %v40, %v547
    %v549 = vand.u32 %v548, 4294901760
    %550 = vmatpush1.msra.mxu0 %v549
    %551 = vmatprep.subr.mxu0 0.0
    %v552 = vand.u32 %v41, 4294901760
    %v553 = vsub.f32 %v41, %v552
    %v554 = vand.u32 %v553, 4294901760
    %555 = vmatpush1.msra.mxu0 %v554
    %556 = vmatprep.subr.mxu0 0.0
    %v557 = vand.u32 %v42, 4294901760
    %v558 = vsub.f32 %v42, %v557
    %v559 = vand.u32 %v558, 4294901760
    %560 = vmatpush1.msra.mxu0 %v559
    %561 = vmatprep.subr.mxu0 0.0
    %v562 = vand.u32 %v43, 4294901760
    %v563 = vsub.f32 %v43, %v562
    %v564 = vand.u32 %v563, 4294901760
    %565 = vmatpush1.msra.mxu0 %v564
    %566 = vmatprep.subr.mxu0 0.0
    %567 = vmatpush1.msra.mxu0 0.0
    %568 = vmatprep.subr.mxu0 0.0
    %569 = vmatpush1.msra.mxu0 0.0
    %570 = vmatprep.subr.mxu0 0.0
    %571 = vmatpush1.msra.mxu0 0.0
    %572 = vmatprep.subr.mxu0 0.0
    %573 = vmatpush1.msra.mxu0 0.0
    %574 = vmatprep.subr.mxu0 0.0
    %575 = vmatpush1.msra.mxu0 0.0
    %576 = vmatprep.subr.mxu0 0.0
    %577 = vmatpush1.msra.mxu0 0.0
    %578 = vmatprep.subr.mxu0 0.0
    %579 = vmatpush1.msra.mxu0 0.0
    %580 = vmatprep.subr.mxu0 0.0
    %581 = vmatpush1.msra.mxu0 0.0
    %582 = vmatprep.subr.mxu0 0.0
    %583 = vmatpush1.msra.mxu0 0.0
    %584 = vmatprep.subr.mxu0 0.0
    %585 = vmatpush1.msra.mxu0 0.0
    %586 = vmatprep.subr.mxu0 0.0
    %587 = vmatpush1.msra.mxu0 0.0
    %588 = vmatprep.subr.mxu0 0.0
    %589 = vmatpush1.msra.mxu0 0.0
    %590 = vmatprep.subr.mxu0 0.0
    %591 = vmatpush1.msra.mxu0 0.0
    %592 = vmatprep.subr.mxu0 0.0
    %593 = vmatpush1.msra.mxu0 0.0
    %594 = vmatprep.subr.mxu0 0.0
    %595 = vmatpush1.msra.mxu0 0.0
    %596 = vmatprep.subr.mxu0 0.0
    %597 = vmatpush1.msra.mxu0 0.0
    %598 = vmatprep.mubr.f32.mxu0 0.0
    %v599 = vand.u32 %v27, 4294901760
    %600 = vmatmul.mubr.f32.gmra.mrb[0].mxu0 %v599
    %v601 = vpop.f32.mrb[0].mxu0
    %v602 = vadd.f32 %v483, %v601
    %v603 = vpop.f32.mrb[0].mxu0
    %604 = vdwg.mxu0
    %605 = vmatprep.subr.mxu0 0.0
    %v606 = vand.u32 %v28, 4294901760
    %607 = vmatpush1.msra.mxu0 %v606
    %608 = vmatprep.subr.mxu0 0.0
    %v609 = vand.u32 %v29, 4294901760
    %610 = vmatpush1.msra.mxu0 %v609
    %611 = vmatprep.subr.mxu0 0.0
    %v612 = vand.u32 %v30, 4294901760
    %613 = vmatpush1.msra.mxu0 %v612
    %614 = vmatprep.subr.mxu0 0.0
    %v615 = vand.u32 %v31, 4294901760
    %616 = vmatpush1.msra.mxu0 %v615
    %617 = vmatprep.subr.mxu0 0.0
    %v618 = vand.u32 %v32, 4294901760
    %619 = vmatpush1.msra.mxu0 %v618
    %620 = vmatprep.subr.mxu0 0.0
    %v621 = vand.u32 %v33, 4294901760
    %622 = vmatpush1.msra.mxu0 %v621
    %623 = vmatprep.subr.mxu0 0.0
    %v624 = vand.u32 %v34, 4294901760
    %625 = vmatpush1.msra.mxu0 %v624
    %626 = vmatprep.subr.mxu0 0.0
    %v627 = vand.u32 %v35, 4294901760
    %628 = vmatpush1.msra.mxu0 %v627
    %629 = vmatprep.subr.mxu0 0.0
    %v630 = vand.u32 %v36, 4294901760
    %631 = vmatpush1.msra.mxu0 %v630
    %632 = vmatprep.subr.mxu0 0.0
    %v633 = vand.u32 %v37, 4294901760
    %634 = vmatpush1.msra.mxu0 %v633
    %635 = vmatprep.subr.mxu0 0.0
    %v636 = vand.u32 %v38, 4294901760
    %637 = vmatpush1.msra.mxu0 %v636
    %638 = vmatprep.subr.mxu0 0.0
    %v639 = vand.u32 %v39, 4294901760
    %640 = vmatpush1.msra.mxu0 %v639
    %641 = vmatprep.subr.mxu0 0.0
    %v642 = vand.u32 %v40, 4294901760
    %643 = vmatpush1.msra.mxu0 %v642
    %644 = vmatprep.subr.mxu0 0.0
    %v645 = vand.u32 %v41, 4294901760
    %646 = vmatpush1.msra.mxu0 %v645
    %647 = vmatprep.subr.mxu0 0.0
    %v648 = vand.u32 %v42, 4294901760
    %649 = vmatpush1.msra.mxu0 %v648
    %650 = vmatprep.subr.mxu0 0.0
    %v651 = vand.u32 %v43, 4294901760
    %652 = vmatpush1.msra.mxu0 %v651
    %653 = vmatprep.subr.mxu0 0.0
    %654 = vmatpush1.msra.mxu0 0.0
    %655 = vmatprep.subr.mxu0 0.0
    %656 = vmatpush1.msra.mxu0 0.0
    %657 = vmatprep.subr.mxu0 0.0
    %658 = vmatpush1.msra.mxu0 0.0
    %659 = vmatprep.subr.mxu0 0.0
    %660 = vmatpush1.msra.mxu0 0.0
    %661 = vmatprep.subr.mxu0 0.0
    %662 = vmatpush1.msra.mxu0 0.0
    %663 = vmatprep.subr.mxu0 0.0
    %664 = vmatpush1.msra.mxu0 0.0
    %665 = vmatprep.subr.mxu0 0.0
    %666 = vmatpush1.msra.mxu0 0.0
    %667 = vmatprep.subr.mxu0 0.0
    %668 = vmatpush1.msra.mxu0 0.0
    %669 = vmatprep.subr.mxu0 0.0
    %670 = vmatpush1.msra.mxu0 0.0
    %671 = vmatprep.subr.mxu0 0.0
    %672 = vmatpush1.msra.mxu0 0.0
    %673 = vmatprep.subr.mxu0 0.0
    %674 = vmatpush1.msra.mxu0 0.0
    %675 = vmatprep.subr.mxu0 0.0
    %676 = vmatpush1.msra.mxu0 0.0
    %677 = vmatprep.subr.mxu0 0.0
    %678 = vmatpush1.msra.mxu0 0.0
    %679 = vmatprep.subr.mxu0 0.0
    %680 = vmatpush1.msra.mxu0 0.0
    %681 = vmatprep.subr.mxu0 0.0
    %682 = vmatpush1.msra.mxu0 0.0
    %683 = vmatprep.subr.mxu0 0.0
    %684 = vmatpush1.msra.mxu0 0.0
    %685 = vmatprep.mubr.f32.mxu0 0.0
    %v686 = vand.u32 %v27, 4294901760
    %687 = vmatmul.mubr.f32.gmra.mrb[0].mxu0 %v686
    %v688 = vpop.f32.mrb[0].mxu0
    %v689 = vadd.f32 %v602, %v688
    %v690 = vpop.f32.mrb[0].mxu0
    %691 = vdwg.mxu0
    %v692 = vmul.f32 %v689, %v689
    %v693 = vld [vmem:[%s3] sm:$0xff]
    %v694 = vld [vmem:[%s3 + $0x8] sm:$0xff]
    %v695 = vld [vmem:[%s3 + $0x10] sm:$0xff]
    %v696 = vld [vmem:[%s3 + $0x18] sm:$0xff]
    %v697 = vld [vmem:[%s3 + $0x20] sm:$0xff]
    %v698 = vld [vmem:[%s3 + $0x28] sm:$0xff]
    %v699 = vld [vmem:[%s3 + $0x30] sm:$0xff]
    %v700 = vld [vmem:[%s3 + $0x38] sm:$0xff]
    %v701 = vld [vmem:[%s3 + $0x40] sm:$0xff]
    %v702 = vld [vmem:[%s3 + $0x48] sm:$0xff]
    %v703 = vld [vmem:[%s3 + $0x50] sm:$0xff]
    %v704 = vld [vmem:[%s3 + $0x58] sm:$0xff]
    %v705 = vld [vmem:[%s3 + $0x60] sm:$0xff]
    %v706 = vld [vmem:[%s3 + $0x68] sm:$0xff]
    %v707 = vld [vmem:[%s3 + $0x70] sm:$0xff]
    %v708 = vld [vmem:[%s3 + $0x78] sm:$0xff]
    %v709 = vld [vmem:[%s4] sm:$0x1]
    %v711 = vlaneseq
    %v712 = vshrl.u32 %v711, 7
    %v713 = vsub.s32 0, %v712
    %v714 = vrot.slane %v709, %v713
    %716 = vmatprep.subr.mxu0 0.0
    %v717 = vand.u32 %v693, 4294901760
    %718 = vmatpush1.msra.mxu0 %v717
    %719 = vmatprep.subr.mxu0 0.0
    %v720 = vand.u32 %v694, 4294901760
    %721 = vmatpush1.msra.mxu0 %v720
    %722 = vmatprep.subr.mxu0 0.0
    %v723 = vand.u32 %v695, 4294901760
    %724 = vmatpush1.msra.mxu0 %v723
    %725 = vmatprep.subr.mxu0 0.0
    %v726 = vand.u32 %v696, 4294901760
    %727 = vmatpush1.msra.mxu0 %v726
    %728 = vmatprep.subr.mxu0 0.0
    %v729 = vand.u32 %v697, 4294901760
    %730 = vmatpush1.msra.mxu0 %v729
    %731 = vmatprep.subr.mxu0 0.0
    %v732 = vand.u32 %v698, 4294901760
    %733 = vmatpush1.msra.mxu0 %v732
    %734 = vmatprep.subr.mxu0 0.0
    %v735 = vand.u32 %v699, 4294901760
    %736 = vmatpush1.msra.mxu0 %v735
    %737 = vmatprep.subr.mxu0 0.0
    %v738 = vand.u32 %v700, 4294901760
    %739 = vmatpush1.msra.mxu0 %v738
    %740 = vmatprep.subr.mxu0 0.0
    %v741 = vand.u32 %v701, 4294901760
    %742 = vmatpush1.msra.mxu0 %v741
    %743 = vmatprep.subr.mxu0 0.0
    %v744 = vand.u32 %v702, 4294901760
    %745 = vmatpush1.msra.mxu0 %v744
    %746 = vmatprep.subr.mxu0 0.0
    %v747 = vand.u32 %v703, 4294901760
    %748 = vmatpush1.msra.mxu0 %v747
    %749 = vmatprep.subr.mxu0 0.0
    %v750 = vand.u32 %v704, 4294901760
    %751 = vmatpush1.msra.mxu0 %v750
    %752 = vmatprep.subr.mxu0 0.0
    %v753 = vand.u32 %v705, 4294901760
    %754 = vmatpush1.msra.mxu0 %v753
    %755 = vmatprep.subr.mxu0 0.0
    %v756 = vand.u32 %v706, 4294901760
    %757 = vmatpush1.msra.mxu0 %v756
    %758 = vmatprep.subr.mxu0 0.0
    %v759 = vand.u32 %v707, 4294901760
    %760 = vmatpush1.msra.mxu0 %v759
    %761 = vmatprep.subr.mxu0 0.0
    %v762 = vand.u32 %v708, 4294901760
    %763 = vmatpush1.msra.mxu0 %v762
    %764 = vmatprep.subr.mxu0 0.0
    %765 = vmatpush1.msra.mxu0 0.0
    %766 = vmatprep.subr.mxu0 0.0
    %767 = vmatpush1.msra.mxu0 0.0
    %768 = vmatprep.subr.mxu0 0.0
    %769 = vmatpush1.msra.mxu0 0.0
    %770 = vmatprep.subr.mxu0 0.0
    %771 = vmatpush1.msra.mxu0 0.0
    %772 = vmatprep.subr.mxu0 0.0
    %773 = vmatpush1.msra.mxu0 0.0
    %774 = vmatprep.subr.mxu0 0.0
    %775 = vmatpush1.msra.mxu0 0.0
    %776 = vmatprep.subr.mxu0 0.0
    %777 = vmatpush1.msra.mxu0 0.0
    %778 = vmatprep.subr.mxu0 0.0
    %779 = vmatpush1.msra.mxu0 0.0
    %780 = vmatprep.subr.mxu0 0.0
    %781 = vmatpush1.msra.mxu0 0.0
    %782 = vmatprep.subr.mxu0 0.0
    %783 = vmatpush1.msra.mxu0 0.0
    %784 = vmatprep.subr.mxu0 0.0
    %785 = vmatpush1.msra.mxu0 0.0
    %786 = vmatprep.subr.mxu0 0.0
    %787 = vmatpush1.msra.mxu0 0.0
    %788 = vmatprep.subr.mxu0 0.0
    %789 = vmatpush1.msra.mxu0 0.0
    %790 = vmatprep.subr.mxu0 0.0
    %791 = vmatpush1.msra.mxu0 0.0
    %792 = vmatprep.subr.mxu0 0.0
    %793 = vmatpush1.msra.mxu0 0.0
    %794 = vmatprep.subr.mxu0 0.0
    %795 = vmatpush1.msra.mxu0 0.0
    %796 = vmatprep.mubr.f32.mxu0 0.0
    %v797 = vand.u32 %v692, 4294901760
    %v798 = vsub.f32 %v692, %v797
    %v799 = vand.u32 %v798, 4294901760
    %v800 = vsub.f32 %v798, %v799
    %v801 = vand.u32 %v800, 4294901760
    %802 = vmatmul.mubr.f32.gmra.mrb[0].mxu0 %v801
    %v803 = vpop.f32.mrb[0].mxu0
    %v804 = vadd.f32 %v714, %v803
    %v805 = vpop.f32.mrb[0].mxu0
    %806 = vdwg.mxu0
    %807 = vmatprep.subr.mxu0 0.0
    %v808 = vand.u32 %v693, 4294901760
    %v809 = vsub.f32 %v693, %v808
    %v810 = vand.u32 %v809, 4294901760
    %v811 = vsub.f32 %v809, %v810
    %v812 = vand.u32 %v811, 4294901760
    %813 = vmatpush1.msra.mxu0 %v812
    %814 = vmatprep.subr.mxu0 0.0
    %v815 = vand.u32 %v694, 4294901760
    %v816 = vsub.f32 %v694, %v815
    %v817 = vand.u32 %v816, 4294901760
    %v818 = vsub.f32 %v816, %v817
    %v819 = vand.u32 %v818, 4294901760
    %820 = vmatpush1.msra.mxu0 %v819
    %821 = vmatprep.subr.mxu0 0.0
    %v822 = vand.u32 %v695, 4294901760
    %v823 = vsub.f32 %v695, %v822
    %v824 = vand.u32 %v823, 4294901760
    %v825 = vsub.f32 %v823, %v824
    %v826 = vand.u32 %v825, 4294901760
    %827 = vmatpush1.msra.mxu0 %v826
    %828 = vmatprep.subr.mxu0 0.0
    %v829 = vand.u32 %v696, 4294901760
    %v830 = vsub.f32 %v696, %v829
    %v831 = vand.u32 %v830, 4294901760
    %v832 = vsub.f32 %v830, %v831
    %v833 = vand.u32 %v832, 4294901760
    %834 = vmatpush1.msra.mxu0 %v833
    %835 = vmatprep.subr.mxu0 0.0
    %v836 = vand.u32 %v697, 4294901760
    %v837 = vsub.f32 %v697, %v836
    %v838 = vand.u32 %v837, 4294901760
    %v839 = vsub.f32 %v837, %v838
    %v840 = vand.u32 %v839, 4294901760
    %841 = vmatpush1.msra.mxu0 %v840
    %842 = vmatprep.subr.mxu0 0.0
    %v843 = vand.u32 %v698, 4294901760
    %v844 = vsub.f32 %v698, %v843
    %v845 = vand.u32 %v844, 4294901760
    %v846 = vsub.f32 %v844, %v845
    %v847 = vand.u32 %v846, 4294901760
    %848 = vmatpush1.msra.mxu0 %v847
    %849 = vmatprep.subr.mxu0 0.0
    %v850 = vand.u32 %v699, 4294901760
    %v851 = vsub.f32 %v699, %v850
    %v852 = vand.u32 %v851, 4294901760
    %v853 = vsub.f32 %v851, %v852
    %v854 = vand.u32 %v853, 4294901760
    %855 = vmatpush1.msra.mxu0 %v854
    %856 = vmatprep.subr.mxu0 0.0
    %v857 = vand.u32 %v700, 4294901760
    %v858 = vsub.f32 %v700, %v857
    %v859 = vand.u32 %v858, 4294901760
    %v860 = vsub.f32 %v858, %v859
    %v861 = vand.u32 %v860, 4294901760
    %862 = vmatpush1.msra.mxu0 %v861
    %863 = vmatprep.subr.mxu0 0.0
    %v864 = vand.u32 %v701, 4294901760
    %v865 = vsub.f32 %v701, %v864
    %v866 = vand.u32 %v865, 4294901760
    %v867 = vsub.f32 %v865, %v866
    %v868 = vand.u32 %v867, 4294901760
    %869 = vmatpush1.msra.mxu0 %v868
    %870 = vmatprep.subr.mxu0 0.0
    %v871 = vand.u32 %v702, 4294901760
    %v872 = vsub.f32 %v702, %v871
    %v873 = vand.u32 %v872, 4294901760
    %v874 = vsub.f32 %v872, %v873
    %v875 = vand.u32 %v874, 4294901760
    %876 = vmatpush1.msra.mxu0 %v875
    %877 = vmatprep.subr.mxu0 0.0
    %v878 = vand.u32 %v703, 4294901760
    %v879 = vsub.f32 %v703, %v878
    %v880 = vand.u32 %v879, 4294901760
    %v881 = vsub.f32 %v879, %v880
    %v882 = vand.u32 %v881, 4294901760
    %883 = vmatpush1.msra.mxu0 %v882
    %884 = vmatprep.subr.mxu0 0.0
    %v885 = vand.u32 %v704, 4294901760
    %v886 = vsub.f32 %v704, %v885
    %v887 = vand.u32 %v886, 4294901760
    %v888 = vsub.f32 %v886, %v887
    %v889 = vand.u32 %v888, 4294901760
    %890 = vmatpush1.msra.mxu0 %v889
    %891 = vmatprep.subr.mxu0 0.0
    %v892 = vand.u32 %v705, 4294901760
    %v893 = vsub.f32 %v705, %v892
    %v894 = vand.u32 %v893, 4294901760
    %v895 = vsub.f32 %v893, %v894
    %v896 = vand.u32 %v895, 4294901760
    %897 = vmatpush1.msra.mxu0 %v896
    %898 = vmatprep.subr.mxu0 0.0
    %v899 = vand.u32 %v706, 4294901760
    %v900 = vsub.f32 %v706, %v899
    %v901 = vand.u32 %v900, 4294901760
    %v902 = vsub.f32 %v900, %v901
    %v903 = vand.u32 %v902, 4294901760
    %904 = vmatpush1.msra.mxu0 %v903
    %905 = vmatprep.subr.mxu0 0.0
    %v906 = vand.u32 %v707, 4294901760
    %v907 = vsub.f32 %v707, %v906
    %v908 = vand.u32 %v907, 4294901760
    %v909 = vsub.f32 %v907, %v908
    %v910 = vand.u32 %v909, 4294901760
    %911 = vmatpush1.msra.mxu0 %v910
    %912 = vmatprep.subr.mxu0 0.0
    %v913 = vand.u32 %v708, 4294901760
    %v914 = vsub.f32 %v708, %v913
    %v915 = vand.u32 %v914, 4294901760
    %v916 = vsub.f32 %v914, %v915
    %v917 = vand.u32 %v916, 4294901760
    %918 = vmatpush1.msra.mxu0 %v917
    %919 = vmatprep.subr.mxu0 0.0
    %920 = vmatpush1.msra.mxu0 0.0
    %921 = vmatprep.subr.mxu0 0.0
    %922 = vmatpush1.msra.mxu0 0.0
    %923 = vmatprep.subr.mxu0 0.0
    %924 = vmatpush1.msra.mxu0 0.0
    %925 = vmatprep.subr.mxu0 0.0
    %926 = vmatpush1.msra.mxu0 0.0
    %927 = vmatprep.subr.mxu0 0.0
    %928 = vmatpush1.msra.mxu0 0.0
    %929 = vmatprep.subr.mxu0 0.0
    %930 = vmatpush1.msra.mxu0 0.0
    %931 = vmatprep.subr.mxu0 0.0
    %932 = vmatpush1.msra.mxu0 0.0
    %933 = vmatprep.subr.mxu0 0.0
    %934 = vmatpush1.msra.mxu0 0.0
    %935 = vmatprep.subr.mxu0 0.0
    %936 = vmatpush1.msra.mxu0 0.0
    %937 = vmatprep.subr.mxu0 0.0
    %938 = vmatpush1.msra.mxu0 0.0
    %939 = vmatprep.subr.mxu0 0.0
    %940 = vmatpush1.msra.mxu0 0.0
    %941 = vmatprep.subr.mxu0 0.0
    %942 = vmatpush1.msra.mxu0 0.0
    %943 = vmatprep.subr.mxu0 0.0
    %944 = vmatpush1.msra.mxu0 0.0
    %945 = vmatprep.subr.mxu0 0.0
    %946 = vmatpush1.msra.mxu0 0.0
    %947 = vmatprep.subr.mxu0 0.0
    %948 = vmatpush1.msra.mxu0 0.0
    %949 = vmatprep.subr.mxu0 0.0
    %950 = vmatpush1.msra.mxu0 0.0
    %951 = vmatprep.mubr.f32.mxu0 0.0
    %v952 = vand.u32 %v692, 4294901760
    %953 = vmatmul.mubr.f32.gmra.mrb[0].mxu0 %v952
    %v954 = vpop.f32.mrb[0].mxu0
    %v955 = vadd.f32 %v804, %v954
    %v956 = vpop.f32.mrb[0].mxu0
    %957 = vdwg.mxu0
    %958 = vmatprep.subr.mxu0 0.0
    %v959 = vand.u32 %v693, 4294901760
    %v960 = vsub.f32 %v693, %v959
    %961 = vmatpush1.msra.mxu0 %v960
    %962 = vmatprep.subr.mxu0 0.0
    %v963 = vand.u32 %v694, 4294901760
    %v964 = vsub.f32 %v694, %v963
    %965 = vmatpush1.msra.mxu0 %v964
    %966 = vmatprep.subr.mxu0 0.0
    %v967 = vand.u32 %v695, 4294901760
    %v968 = vsub.f32 %v695, %v967
    %969 = vmatpush1.msra.mxu0 %v968
    %970 = vmatprep.subr.mxu0 0.0
    %v971 = vand.u32 %v696, 4294901760
    %v972 = vsub.f32 %v696, %v971
    %973 = vmatpush1.msra.mxu0 %v972
    %974 = vmatprep.subr.mxu0 0.0
    %v975 = vand.u32 %v697, 4294901760
    %v976 = vsub.f32 %v697, %v975
    %977 = vmatpush1.msra.mxu0 %v976
    %978 = vmatprep.subr.mxu0 0.0
    %v979 = vand.u32 %v698, 4294901760
    %v980 = vsub.f32 %v698, %v979
    %981 = vmatpush1.msra.mxu0 %v980
    %982 = vmatprep.subr.mxu0 0.0
    %v983 = vand.u32 %v699, 4294901760
    %v984 = vsub.f32 %v699, %v983
    %985 = vmatpush1.msra.mxu0 %v984
    %986 = vmatprep.subr.mxu0 0.0
    %v987 = vand.u32 %v700, 4294901760
    %v988 = vsub.f32 %v700, %v987
    %989 = vmatpush1.msra.mxu0 %v988
    %990 = vmatprep.subr.mxu0 0.0
    %v991 = vand.u32 %v701, 4294901760
    %v992 = vsub.f32 %v701, %v991
    %993 = vmatpush1.msra.mxu0 %v992
    %994 = vmatprep.subr.mxu0 0.0
    %v995 = vand.u32 %v702, 4294901760
    %v996 = vsub.f32 %v702, %v995
    %997 = vmatpush1.msra.mxu0 %v996
    %998 = vmatprep.subr.mxu0 0.0
    %v999 = vand.u32 %v703, 4294901760
    %v1000 = vsub.f32 %v703, %v999
    %1001 = vmatpush1.msra.mxu0 %v1000
    %1002 = vmatprep.subr.mxu0 0.0
    %v1003 = vand.u32 %v704, 4294901760
    %v1004 = vsub.f32 %v704, %v1003
    %1005 = vmatpush1.msra.mxu0 %v1004
    %1006 = vmatprep.subr.mxu0 0.0
    %v1007 = vand.u32 %v705, 4294901760
    %v1008 = vsub.f32 %v705, %v1007
    %1009 = vmatpush1.msra.mxu0 %v1008
    %1010 = vmatprep.subr.mxu0 0.0
    %v1011 = vand.u32 %v706, 4294901760
    %v1012 = vsub.f32 %v706, %v1011
    %1013 = vmatpush1.msra.mxu0 %v1012
    %1014 = vmatprep.subr.mxu0 0.0
    %v1015 = vand.u32 %v707, 4294901760
    %v1016 = vsub.f32 %v707, %v1015
    %1017 = vmatpush1.msra.mxu0 %v1016
    %1018 = vmatprep.subr.mxu0 0.0
    %v1019 = vand.u32 %v708, 4294901760
    %v1020 = vsub.f32 %v708, %v1019
    %1021 = vmatpush1.msra.mxu0 %v1020
    %1022 = vmatprep.subr.mxu0 0.0
    %1023 = vmatpush1.msra.mxu0 0.0
    %1024 = vmatprep.subr.mxu0 0.0
    %1025 = vmatpush1.msra.mxu0 0.0
    %1026 = vmatprep.subr.mxu0 0.0
    %1027 = vmatpush1.msra.mxu0 0.0
    %1028 = vmatprep.subr.mxu0 0.0
    %1029 = vmatpush1.msra.mxu0 0.0
    %1030 = vmatprep.subr.mxu0 0.0
    %1031 = vmatpush1.msra.mxu0 0.0
    %1032 = vmatprep.subr.mxu0 0.0
    %1033 = vmatpush1.msra.mxu0 0.0
    %1034 = vmatprep.subr.mxu0 0.0
    %1035 = vmatpush1.msra.mxu0 0.0
    %1036 = vmatprep.subr.mxu0 0.0
    %1037 = vmatpush1.msra.mxu0 0.0
    %1038 = vmatprep.subr.mxu0 0.0
    %1039 = vmatpush1.msra.mxu0 0.0
    %1040 = vmatprep.subr.mxu0 0.0
    %1041 = vmatpush1.msra.mxu0 0.0
    %1042 = vmatprep.subr.mxu0 0.0
    %1043 = vmatpush1.msra.mxu0 0.0
    %1044 = vmatprep.subr.mxu0 0.0
    %1045 = vmatpush1.msra.mxu0 0.0
    %1046 = vmatprep.subr.mxu0 0.0
    %1047 = vmatpush1.msra.mxu0 0.0
    %1048 = vmatprep.subr.mxu0 0.0
    %1049 = vmatpush1.msra.mxu0 0.0
    %1050 = vmatprep.subr.mxu0 0.0
    %1051 = vmatpush1.msra.mxu0 0.0
    %1052 = vmatprep.subr.mxu0 0.0
    %1053 = vmatpush1.msra.mxu0 0.0
    %1054 = vmatprep.mubr.f32.mxu0 0.0
    %v1055 = vand.u32 %v692, 4294901760
    %v1056 = vsub.f32 %v692, %v1055
    %1057 = vmatmul.mubr.f32.gmra.mrb[0].mxu0 %v1056
    %v1058 = vpop.f32.mrb[0].mxu0
    %v1059 = vadd.f32 %v955, %v1058
    %v1060 = vpop.f32.mrb[0].mxu0
    %1061 = vdwg.mxu0
    %1062 = vmatprep.subr.mxu0 0.0
    %v1063 = vand.u32 %v693, 4294901760
    %1064 = vmatpush1.msra.mxu0 %v1063
    %1065 = vmatprep.subr.mxu0 0.0
    %v1066 = vand.u32 %v694, 4294901760
    %1067 = vmatpush1.msra.mxu0 %v1066
    %1068 = vmatprep.subr.mxu0 0.0
    %v1069 = vand.u32 %v695, 4294901760
    %1070 = vmatpush1.msra.mxu0 %v1069
    %1071 = vmatprep.subr.mxu0 0.0
    %v1072 = vand.u32 %v696, 4294901760
    %1073 = vmatpush1.msra.mxu0 %v1072
    %1074 = vmatprep.subr.mxu0 0.0
    %v1075 = vand.u32 %v697, 4294901760
    %1076 = vmatpush1.msra.mxu0 %v1075
    %1077 = vmatprep.subr.mxu0 0.0
    %v1078 = vand.u32 %v698, 4294901760
    %1079 = vmatpush1.msra.mxu0 %v1078
    %1080 = vmatprep.subr.mxu0 0.0
    %v1081 = vand.u32 %v699, 4294901760
    %1082 = vmatpush1.msra.mxu0 %v1081
    %1083 = vmatprep.subr.mxu0 0.0
    %v1084 = vand.u32 %v700, 4294901760
    %1085 = vmatpush1.msra.mxu0 %v1084
    %1086 = vmatprep.subr.mxu0 0.0
    %v1087 = vand.u32 %v701, 4294901760
    %1088 = vmatpush1.msra.mxu0 %v1087
    %1089 = vmatprep.subr.mxu0 0.0
    %v1090 = vand.u32 %v702, 4294901760
    %1091 = vmatpush1.msra.mxu0 %v1090
    %1092 = vmatprep.subr.mxu0 0.0
    %v1093 = vand.u32 %v703, 4294901760
    %1094 = vmatpush1.msra.mxu0 %v1093
    %1095 = vmatprep.subr.mxu0 0.0
    %v1096 = vand.u32 %v704, 4294901760
    %1097 = vmatpush1.msra.mxu0 %v1096
    %1098 = vmatprep.subr.mxu0 0.0
    %v1099 = vand.u32 %v705, 4294901760
    %1100 = vmatpush1.msra.mxu0 %v1099
    %1101 = vmatprep.subr.mxu0 0.0
    %v1102 = vand.u32 %v706, 4294901760
    %1103 = vmatpush1.msra.mxu0 %v1102
    %1104 = vmatprep.subr.mxu0 0.0
    %v1105 = vand.u32 %v707, 4294901760
    %1106 = vmatpush1.msra.mxu0 %v1105
    %1107 = vmatprep.subr.mxu0 0.0
    %v1108 = vand.u32 %v708, 4294901760
    %1109 = vmatpush1.msra.mxu0 %v1108
    %1110 = vmatprep.subr.mxu0 0.0
    %1111 = vmatpush1.msra.mxu0 0.0
    %1112 = vmatprep.subr.mxu0 0.0
    %1113 = vmatpush1.msra.mxu0 0.0
    %1114 = vmatprep.subr.mxu0 0.0
    %1115 = vmatpush1.msra.mxu0 0.0
    %1116 = vmatprep.subr.mxu0 0.0
    %1117 = vmatpush1.msra.mxu0 0.0
    %1118 = vmatprep.subr.mxu0 0.0
    %1119 = vmatpush1.msra.mxu0 0.0
    %1120 = vmatprep.subr.mxu0 0.0
    %1121 = vmatpush1.msra.mxu0 0.0
    %1122 = vmatprep.subr.mxu0 0.0
    %1123 = vmatpush1.msra.mxu0 0.0
    %1124 = vmatprep.subr.mxu0 0.0
    %1125 = vmatpush1.msra.mxu0 0.0
    %1126 = vmatprep.subr.mxu0 0.0
    %1127 = vmatpush1.msra.mxu0 0.0
    %1128 = vmatprep.subr.mxu0 0.0
    %1129 = vmatpush1.msra.mxu0 0.0
    %1130 = vmatprep.subr.mxu0 0.0
    %1131 = vmatpush1.msra.mxu0 0.0
    %1132 = vmatprep.subr.mxu0 0.0
    %1133 = vmatpush1.msra.mxu0 0.0
    %1134 = vmatprep.subr.mxu0 0.0
    %1135 = vmatpush1.msra.mxu0 0.0
    %1136 = vmatprep.subr.mxu0 0.0
    %1137 = vmatpush1.msra.mxu0 0.0
    %1138 = vmatprep.subr.mxu0 0.0
    %1139 = vmatpush1.msra.mxu0 0.0
    %1140 = vmatprep.subr.mxu0 0.0
    %1141 = vmatpush1.msra.mxu0 0.0
    %1142 = vmatprep.mubr.f32.mxu0 0.0
    %v1143 = vand.u32 %v692, 4294901760
    %v1144 = vsub.f32 %v692, %v1143
    %v1145 = vand.u32 %v1144, 4294901760
    %1146 = vmatmul.mubr.f32.gmra.mrb[0].mxu0 %v1145
    %v1147 = vpop.f32.mrb[0].mxu0
    %v1148 = vadd.f32 %v1059, %v1147
    %v1149 = vpop.f32.mrb[0].mxu0
    %1150 = vdwg.mxu0
    %1151 = vmatprep.subr.mxu0 0.0
    %v1152 = vand.u32 %v693, 4294901760
    %v1153 = vsub.f32 %v693, %v1152
    %v1154 = vand.u32 %v1153, 4294901760
    %1155 = vmatpush1.msra.mxu0 %v1154
    %1156 = vmatprep.subr.mxu0 0.0
    %v1157 = vand.u32 %v694, 4294901760
    %v1158 = vsub.f32 %v694, %v1157
    %v1159 = vand.u32 %v1158, 4294901760
    %1160 = vmatpush1.msra.mxu0 %v1159
    %1161 = vmatprep.subr.mxu0 0.0
    %v1162 = vand.u32 %v695, 4294901760
    %v1163 = vsub.f32 %v695, %v1162
    %v1164 = vand.u32 %v1163, 4294901760
    %1165 = vmatpush1.msra.mxu0 %v1164
    %1166 = vmatprep.subr.mxu0 0.0
    %v1167 = vand.u32 %v696, 4294901760
    %v1168 = vsub.f32 %v696, %v1167
    %v1169 = vand.u32 %v1168, 4294901760
    %1170 = vmatpush1.msra.mxu0 %v1169
    %1171 = vmatprep.subr.mxu0 0.0
    %v1172 = vand.u32 %v697, 4294901760
    %v1173 = vsub.f32 %v697, %v1172
    %v1174 = vand.u32 %v1173, 4294901760
    %1175 = vmatpush1.msra.mxu0 %v1174
    %1176 = vmatprep.subr.mxu0 0.0
    %v1177 = vand.u32 %v698, 4294901760
    %v1178 = vsub.f32 %v698, %v1177
    %v1179 = vand.u32 %v1178, 4294901760
    %1180 = vmatpush1.msra.mxu0 %v1179
    %1181 = vmatprep.subr.mxu0 0.0
    %v1182 = vand.u32 %v699, 4294901760
    %v1183 = vsub.f32 %v699, %v1182
    %v1184 = vand.u32 %v1183, 4294901760
    %1185 = vmatpush1.msra.mxu0 %v1184
    %1186 = vmatprep.subr.mxu0 0.0
    %v1187 = vand.u32 %v700, 4294901760
    %v1188 = vsub.f32 %v700, %v1187
    %v1189 = vand.u32 %v1188, 4294901760
    %1190 = vmatpush1.msra.mxu0 %v1189
    %1191 = vmatprep.subr.mxu0 0.0
    %v1192 = vand.u32 %v701, 4294901760
    %v1193 = vsub.f32 %v701, %v1192
    %v1194 = vand.u32 %v1193, 4294901760
    %1195 = vmatpush1.msra.mxu0 %v1194
    %1196 = vmatprep.subr.mxu0 0.0
    %v1197 = vand.u32 %v702, 4294901760
    %v1198 = vsub.f32 %v702, %v1197
    %v1199 = vand.u32 %v1198, 4294901760
    %1200 = vmatpush1.msra.mxu0 %v1199
    %1201 = vmatprep.subr.mxu0 0.0
    %v1202 = vand.u32 %v703, 4294901760
    %v1203 = vsub.f32 %v703, %v1202
    %v1204 = vand.u32 %v1203, 4294901760
    %1205 = vmatpush1.msra.mxu0 %v1204
    %1206 = vmatprep.subr.mxu0 0.0
    %v1207 = vand.u32 %v704, 4294901760
    %v1208 = vsub.f32 %v704, %v1207
    %v1209 = vand.u32 %v1208, 4294901760
    %1210 = vmatpush1.msra.mxu0 %v1209
    %1211 = vmatprep.subr.mxu0 0.0
    %v1212 = vand.u32 %v705, 4294901760
    %v1213 = vsub.f32 %v705, %v1212
    %v1214 = vand.u32 %v1213, 4294901760
    %1215 = vmatpush1.msra.mxu0 %v1214
    %1216 = vmatprep.subr.mxu0 0.0
    %v1217 = vand.u32 %v706, 4294901760
    %v1218 = vsub.f32 %v706, %v1217
    %v1219 = vand.u32 %v1218, 4294901760
    %1220 = vmatpush1.msra.mxu0 %v1219
    %1221 = vmatprep.subr.mxu0 0.0
    %v1222 = vand.u32 %v707, 4294901760
    %v1223 = vsub.f32 %v707, %v1222
    %v1224 = vand.u32 %v1223, 4294901760
    %1225 = vmatpush1.msra.mxu0 %v1224
    %1226 = vmatprep.subr.mxu0 0.0
    %v1227 = vand.u32 %v708, 4294901760
    %v1228 = vsub.f32 %v708, %v1227
    %v1229 = vand.u32 %v1228, 4294901760
    %1230 = vmatpush1.msra.mxu0 %v1229
    %1231 = vmatprep.subr.mxu0 0.0
    %1232 = vmatpush1.msra.mxu0 0.0
    %1233 = vmatprep.subr.mxu0 0.0
    %1234 = vmatpush1.msra.mxu0 0.0
    %1235 = vmatprep.subr.mxu0 0.0
    %1236 = vmatpush1.msra.mxu0 0.0
    %1237 = vmatprep.subr.mxu0 0.0
    %1238 = vmatpush1.msra.mxu0 0.0
    %1239 = vmatprep.subr.mxu0 0.0
    %1240 = vmatpush1.msra.mxu0 0.0
    %1241 = vmatprep.subr.mxu0 0.0
    %1242 = vmatpush1.msra.mxu0 0.0
    %1243 = vmatprep.subr.mxu0 0.0
    %1244 = vmatpush1.msra.mxu0 0.0
    %1245 = vmatprep.subr.mxu0 0.0
    %1246 = vmatpush1.msra.mxu0 0.0
    %1247 = vmatprep.subr.mxu0 0.0
    %1248 = vmatpush1.msra.mxu0 0.0
    %1249 = vmatprep.subr.mxu0 0.0
    %1250 = vmatpush1.msra.mxu0 0.0
    %1251 = vmatprep.subr.mxu0 0.0
    %1252 = vmatpush1.msra.mxu0 0.0
    %1253 = vmatprep.subr.mxu0 0.0
    %1254 = vmatpush1.msra.mxu0 0.0
    %1255 = vmatprep.subr.mxu0 0.0
    %1256 = vmatpush1.msra.mxu0 0.0
    %1257 = vmatprep.subr.mxu0 0.0
    %1258 = vmatpush1.msra.mxu0 0.0
    %1259 = vmatprep.subr.mxu0 0.0
    %1260 = vmatpush1.msra.mxu0 0.0
    %1261 = vmatprep.subr.mxu0 0.0
    %1262 = vmatpush1.msra.mxu0 0.0
    %1263 = vmatprep.mubr.f32.mxu0 0.0
    %v1264 = vand.u32 %v692, 4294901760
    %1265 = vmatmul.mubr.f32.gmra.mrb[0].mxu0 %v1264
    %v1266 = vpop.f32.mrb[0].mxu0
    %v1267 = vadd.f32 %v1148, %v1266
    %v1268 = vpop.f32.mrb[0].mxu0
    %1269 = vdwg.mxu0
    %1270 = vmatprep.subr.mxu0 0.0
    %v1271 = vand.u32 %v693, 4294901760
    %1272 = vmatpush1.msra.mxu0 %v1271
    %1273 = vmatprep.subr.mxu0 0.0
    %v1274 = vand.u32 %v694, 4294901760
    %1275 = vmatpush1.msra.mxu0 %v1274
    %1276 = vmatprep.subr.mxu0 0.0
    %v1277 = vand.u32 %v695, 4294901760
    %1278 = vmatpush1.msra.mxu0 %v1277
    %1279 = vmatprep.subr.mxu0 0.0
    %v1280 = vand.u32 %v696, 4294901760
    %1281 = vmatpush1.msra.mxu0 %v1280
    %1282 = vmatprep.subr.mxu0 0.0
    %v1283 = vand.u32 %v697, 4294901760
    %1284 = vmatpush1.msra.mxu0 %v1283
    %1285 = vmatprep.subr.mxu0 0.0
    %v1286 = vand.u32 %v698, 4294901760
    %1287 = vmatpush1.msra.mxu0 %v1286
    %1288 = vmatprep.subr.mxu0 0.0
    %v1289 = vand.u32 %v699, 4294901760
    %1290 = vmatpush1.msra.mxu0 %v1289
    %1291 = vmatprep.subr.mxu0 0.0
    %v1292 = vand.u32 %v700, 4294901760
    %1293 = vmatpush1.msra.mxu0 %v1292
    %1294 = vmatprep.subr.mxu0 0.0
    %v1295 = vand.u32 %v701, 4294901760
    %1296 = vmatpush1.msra.mxu0 %v1295
    %1297 = vmatprep.subr.mxu0 0.0
    %v1298 = vand.u32 %v702, 4294901760
    %1299 = vmatpush1.msra.mxu0 %v1298
    %1300 = vmatprep.subr.mxu0 0.0
    %v1301 = vand.u32 %v703, 4294901760
    %1302 = vmatpush1.msra.mxu0 %v1301
    %1303 = vmatprep.subr.mxu0 0.0
    %v1304 = vand.u32 %v704, 4294901760
    %1305 = vmatpush1.msra.mxu0 %v1304
    %1306 = vmatprep.subr.mxu0 0.0
    %v1307 = vand.u32 %v705, 4294901760
    %1308 = vmatpush1.msra.mxu0 %v1307
    %1309 = vmatprep.subr.mxu0 0.0
    %v1310 = vand.u32 %v706, 4294901760
    %1311 = vmatpush1.msra.mxu0 %v1310
    %1312 = vmatprep.subr.mxu0 0.0
    %v1313 = vand.u32 %v707, 4294901760
    %1314 = vmatpush1.msra.mxu0 %v1313
    %1315 = vmatprep.subr.mxu0 0.0
    %v1316 = vand.u32 %v708, 4294901760
    %1317 = vmatpush1.msra.mxu0 %v1316
    %1318 = vmatprep.subr.mxu0 0.0
    %1319 = vmatpush1.msra.mxu0 0.0
    %1320 = vmatprep.subr.mxu0 0.0
    %1321 = vmatpush1.msra.mxu0 0.0
    %1322 = vmatprep.subr.mxu0 0.0
    %1323 = vmatpush1.msra.mxu0 0.0
    %1324 = vmatprep.subr.mxu0 0.0
    %1325 = vmatpush1.msra.mxu0 0.0
    %1326 = vmatprep.subr.mxu0 0.0
    %1327 = vmatpush1.msra.mxu0 0.0
    %1328 = vmatprep.subr.mxu0 0.0
    %1329 = vmatpush1.msra.mxu0 0.0
    %1330 = vmatprep.subr.mxu0 0.0
    %1331 = vmatpush1.msra.mxu0 0.0
    %1332 = vmatprep.subr.mxu0 0.0
    %1333 = vmatpush1.msra.mxu0 0.0
    %1334 = vmatprep.subr.mxu0 0.0
    %1335 = vmatpush1.msra.mxu0 0.0
    %1336 = vmatprep.subr.mxu0 0.0
    %1337 = vmatpush1.msra.mxu0 0.0
    %1338 = vmatprep.subr.mxu0 0.0
    %1339 = vmatpush1.msra.mxu0 0.0
    %1340 = vmatprep.subr.mxu0 0.0
    %1341 = vmatpush1.msra.mxu0 0.0
    %1342 = vmatprep.subr.mxu0 0.0
    %1343 = vmatpush1.msra.mxu0 0.0
    %1344 = vmatprep.subr.mxu0 0.0
    %1345 = vmatpush1.msra.mxu0 0.0
    %1346 = vmatprep.subr.mxu0 0.0
    %1347 = vmatpush1.msra.mxu0 0.0
    %1348 = vmatprep.subr.mxu0 0.0
    %1349 = vmatpush1.msra.mxu0 0.0
    %1350 = vmatprep.mubr.f32.mxu0 0.0
    %v1351 = vand.u32 %v692, 4294901760
    %1352 = vmatmul.mubr.f32.gmra.mrb[0].mxu0 %v1351
    %v1353 = vpop.f32.mrb[0].mxu0
    %v1354 = vadd.f32 %v1267, %v1353
    %v1355 = vpop.f32.mrb[0].mxu0
    %1356 = vdwg.mxu0
    %v1357 = vmul.f32 %v1354, %v1354
    %v1358 = vld [vmem:[%s5] sm:$0xff]
    %v1359 = vld [vmem:[%s5 + $0x8] sm:$0xff]
    %v1360 = vld [vmem:[%s5 + $0x10] sm:$0xff]
    %v1361 = vld [vmem:[%s5 + $0x18] sm:$0xff]
    %v1362 = vld [vmem:[%s6] sm:$0x1]
    %v1364 = vlaneseq
    %v1365 = vshrl.u32 %v1364, 7
    %v1366 = vsub.s32 0, %v1365
    %v1367 = vrot.slane %v1362, %v1366
    %vm1369 = vcmask 261120
    %v1371 = vsel %vm1369, %v1357, 0
    %1373 = vmatprep.subr.mxu0 0.0
    %v1374 = vand.u32 %v1358, 4294901760
    %1375 = vmatpush1.msra.mxu0 %v1374
    %1376 = vmatprep.subr.mxu0 0.0
    %v1377 = vand.u32 %v1359, 4294901760
    %1378 = vmatpush1.msra.mxu0 %v1377
    %1379 = vmatprep.subr.mxu0 0.0
    %v1380 = vand.u32 %v1360, 4294901760
    %1381 = vmatpush1.msra.mxu0 %v1380
    %1382 = vmatprep.subr.mxu0 0.0
    %v1383 = vand.u32 %v1361, 4294901760
    %1384 = vmatpush1.msra.mxu0 %v1383
    %1385 = vmatprep.subr.mxu0 0.0
    %1386 = vmatpush1.msra.mxu0 0.0
    %1387 = vmatprep.subr.mxu0 0.0
    %1388 = vmatpush1.msra.mxu0 0.0
    %1389 = vmatprep.subr.mxu0 0.0
    %1390 = vmatpush1.msra.mxu0 0.0
    %1391 = vmatprep.subr.mxu0 0.0
    %1392 = vmatpush1.msra.mxu0 0.0
    %1393 = vmatprep.subr.mxu0 0.0
    %1394 = vmatpush1.msra.mxu0 0.0
    %1395 = vmatprep.subr.mxu0 0.0
    %1396 = vmatpush1.msra.mxu0 0.0
    %1397 = vmatprep.subr.mxu0 0.0
    %1398 = vmatpush1.msra.mxu0 0.0
    %1399 = vmatprep.subr.mxu0 0.0
    %1400 = vmatpush1.msra.mxu0 0.0
    %1401 = vmatprep.subr.mxu0 0.0
    %1402 = vmatpush1.msra.mxu0 0.0
    %1403 = vmatprep.subr.mxu0 0.0
    %1404 = vmatpush1.msra.mxu0 0.0
    %1405 = vmatprep.subr.mxu0 0.0
    %1406 = vmatpush1.msra.mxu0 0.0
    %1407 = vmatprep.subr.mxu0 0.0
    %1408 = vmatpush1.msra.mxu0 0.0
    %1409 = vmatprep.subr.mxu0 0.0
    %1410 = vmatpush1.msra.mxu0 0.0
    %1411 = vmatprep.subr.mxu0 0.0
    %1412 = vmatpush1.msra.mxu0 0.0
    %1413 = vmatprep.subr.mxu0 0.0
    %1414 = vmatpush1.msra.mxu0 0.0
    %1415 = vmatprep.subr.mxu0 0.0
    %1416 = vmatpush1.msra.mxu0 0.0
    %1417 = vmatprep.subr.mxu0 0.0
    %1418 = vmatpush1.msra.mxu0 0.0
    %1419 = vmatprep.subr.mxu0 0.0
    %1420 = vmatpush1.msra.mxu0 0.0
    %1421 = vmatprep.subr.mxu0 0.0
    %1422 = vmatpush1.msra.mxu0 0.0
    %1423 = vmatprep.subr.mxu0 0.0
    %1424 = vmatpush1.msra.mxu0 0.0
    %1425 = vmatprep.subr.mxu0 0.0
    %1426 = vmatpush1.msra.mxu0 0.0
    %1427 = vmatprep.subr.mxu0 0.0
    %1428 = vmatpush1.msra.mxu0 0.0
    %1429 = vmatprep.subr.mxu0 0.0
    %1430 = vmatpush1.msra.mxu0 0.0
    %1431 = vmatprep.subr.mxu0 0.0
    %1432 = vmatpush1.msra.mxu0 0.0
    %1433 = vmatprep.subr.mxu0 0.0
    %1434 = vmatpush1.msra.mxu0 0.0
    %1435 = vmatprep.subr.mxu0 0.0
    %1436 = vmatpush1.msra.mxu0 0.0
    %1437 = vmatprep.subr.mxu0 0.0
    %1438 = vmatpush1.msra.mxu0 0.0
    %1439 = vmatprep.subr.mxu0 0.0
    %1440 = vmatpush1.msra.mxu0 0.0
    %1441 = vmatprep.mubr.f32.mxu0 0.0
    %v1442 = vand.u32 %v1371, 4294901760
    %v1443 = vsub.f32 %v1371, %v1442
    %v1444 = vand.u32 %v1443, 4294901760
    %v1445 = vsub.f32 %v1443, %v1444
    %v1446 = vand.u32 %v1445, 4294901760
    %1447 = vmatmul.mubr.f32.gmra.mrb[0].mxu0 %v1446
    %v1448 = vpop.f32.mrb[0].mxu0
    %v1449 = vadd.f32 %v1367, %v1448
    %v1450 = vpop.f32.mrb[0].mxu0
    %1451 = vdwg.mxu0
    %1452 = vmatprep.subr.mxu0 0.0
    %v1453 = vand.u32 %v1358, 4294901760
    %v1454 = vsub.f32 %v1358, %v1453
    %v1455 = vand.u32 %v1454, 4294901760
    %v1456 = vsub.f32 %v1454, %v1455
    %v1457 = vand.u32 %v1456, 4294901760
    %1458 = vmatpush1.msra.mxu0 %v1457
    %1459 = vmatprep.subr.mxu0 0.0
    %v1460 = vand.u32 %v1359, 4294901760
    %v1461 = vsub.f32 %v1359, %v1460
    %v1462 = vand.u32 %v1461, 4294901760
    %v1463 = vsub.f32 %v1461, %v1462
    %v1464 = vand.u32 %v1463, 4294901760
    %1465 = vmatpush1.msra.mxu0 %v1464
    %1466 = vmatprep.subr.mxu0 0.0
    %v1467 = vand.u32 %v1360, 4294901760
    %v1468 = vsub.f32 %v1360, %v1467
    %v1469 = vand.u32 %v1468, 4294901760
    %v1470 = vsub.f32 %v1468, %v1469
    %v1471 = vand.u32 %v1470, 4294901760
    %1472 = vmatpush1.msra.mxu0 %v1471
    %1473 = vmatprep.subr.mxu0 0.0
    %v1474 = vand.u32 %v1361, 4294901760
    %v1475 = vsub.f32 %v1361, %v1474
    %v1476 = vand.u32 %v1475, 4294901760
    %v1477 = vsub.f32 %v1475, %v1476
    %v1478 = vand.u32 %v1477, 4294901760
    %1479 = vmatpush1.msra.mxu0 %v1478
    %1480 = vmatprep.subr.mxu0 0.0
    %1481 = vmatpush1.msra.mxu0 0.0
    %1482 = vmatprep.subr.mxu0 0.0
    %1483 = vmatpush1.msra.mxu0 0.0
    %1484 = vmatprep.subr.mxu0 0.0
    %1485 = vmatpush1.msra.mxu0 0.0
    %1486 = vmatprep.subr.mxu0 0.0
    %1487 = vmatpush1.msra.mxu0 0.0
    %1488 = vmatprep.subr.mxu0 0.0
    %1489 = vmatpush1.msra.mxu0 0.0
    %1490 = vmatprep.subr.mxu0 0.0
    %1491 = vmatpush1.msra.mxu0 0.0
    %1492 = vmatprep.subr.mxu0 0.0
    %1493 = vmatpush1.msra.mxu0 0.0
    %1494 = vmatprep.subr.mxu0 0.0
    %1495 = vmatpush1.msra.mxu0 0.0
    %1496 = vmatprep.subr.mxu0 0.0
    %1497 = vmatpush1.msra.mxu0 0.0
    %1498 = vmatprep.subr.mxu0 0.0
    %1499 = vmatpush1.msra.mxu0 0.0
    %1500 = vmatprep.subr.mxu0 0.0
    %1501 = vmatpush1.msra.mxu0 0.0
    %1502 = vmatprep.subr.mxu0 0.0
    %1503 = vmatpush1.msra.mxu0 0.0
    %1504 = vmatprep.subr.mxu0 0.0
    %1505 = vmatpush1.msra.mxu0 0.0
    %1506 = vmatprep.subr.mxu0 0.0
    %1507 = vmatpush1.msra.mxu0 0.0
    %1508 = vmatprep.subr.mxu0 0.0
    %1509 = vmatpush1.msra.mxu0 0.0
    %1510 = vmatprep.subr.mxu0 0.0
    %1511 = vmatpush1.msra.mxu0 0.0
    %1512 = vmatprep.subr.mxu0 0.0
    %1513 = vmatpush1.msra.mxu0 0.0
    %1514 = vmatprep.subr.mxu0 0.0
    %1515 = vmatpush1.msra.mxu0 0.0
    %1516 = vmatprep.subr.mxu0 0.0
    %1517 = vmatpush1.msra.mxu0 0.0
    %1518 = vmatprep.subr.mxu0 0.0
    %1519 = vmatpush1.msra.mxu0 0.0
    %1520 = vmatprep.subr.mxu0 0.0
    %1521 = vmatpush1.msra.mxu0 0.0
    %1522 = vmatprep.subr.mxu0 0.0
    %1523 = vmatpush1.msra.mxu0 0.0
    %1524 = vmatprep.subr.mxu0 0.0
    %1525 = vmatpush1.msra.mxu0 0.0
    %1526 = vmatprep.subr.mxu0 0.0
    %1527 = vmatpush1.msra.mxu0 0.0
    %1528 = vmatprep.subr.mxu0 0.0
    %1529 = vmatpush1.msra.mxu0 0.0
    %1530 = vmatprep.subr.mxu0 0.0
    %1531 = vmatpush1.msra.mxu0 0.0
    %1532 = vmatprep.subr.mxu0 0.0
    %1533 = vmatpush1.msra.mxu0 0.0
    %1534 = vmatprep.subr.mxu0 0.0
    %1535 = vmatpush1.msra.mxu0 0.0
    %1536 = vmatprep.mubr.f32.mxu0 0.0
    %v1537 = vand.u32 %v1371, 4294901760
    %1538 = vmatmul.mubr.f32.gmra.mrb[0].mxu0 %v1537
    %v1539 = vpop.f32.mrb[0].mxu0
    %v1540 = vadd.f32 %v1449, %v1539
    %v1541 = vpop.f32.mrb[0].mxu0
    %1542 = vdwg.mxu0
    %1543 = vmatprep.subr.mxu0 0.0
    %v1544 = vand.u32 %v1358, 4294901760
    %v1545 = vsub.f32 %v1358, %v1544
    %1546 = vmatpush1.msra.mxu0 %v1545
    %1547 = vmatprep.subr.mxu0 0.0
    %v1548 = vand.u32 %v1359, 4294901760
    %v1549 = vsub.f32 %v1359, %v1548
    %1550 = vmatpush1.msra.mxu0 %v1549
    %1551 = vmatprep.subr.mxu0 0.0
    %v1552 = vand.u32 %v1360, 4294901760
    %v1553 = vsub.f32 %v1360, %v1552
    %1554 = vmatpush1.msra.mxu0 %v1553
    %1555 = vmatprep.subr.mxu0 0.0
    %v1556 = vand.u32 %v1361, 4294901760
    %v1557 = vsub.f32 %v1361, %v1556
    %1558 = vmatpush1.msra.mxu0 %v1557
    %1559 = vmatprep.subr.mxu0 0.0
    %1560 = vmatpush1.msra.mxu0 0.0
    %1561 = vmatprep.subr.mxu0 0.0
    %1562 = vmatpush1.msra.mxu0 0.0
    %1563 = vmatprep.subr.mxu0 0.0
    %1564 = vmatpush1.msra.mxu0 0.0
    %1565 = vmatprep.subr.mxu0 0.0
    %1566 = vmatpush1.msra.mxu0 0.0
    %1567 = vmatprep.subr.mxu0 0.0
    %1568 = vmatpush1.msra.mxu0 0.0
    %1569 = vmatprep.subr.mxu0 0.0
    %1570 = vmatpush1.msra.mxu0 0.0
    %1571 = vmatprep.subr.mxu0 0.0
    %1572 = vmatpush1.msra.mxu0 0.0
    %1573 = vmatprep.subr.mxu0 0.0
    %1574 = vmatpush1.msra.mxu0 0.0
    %1575 = vmatprep.subr.mxu0 0.0
    %1576 = vmatpush1.msra.mxu0 0.0
    %1577 = vmatprep.subr.mxu0 0.0
    %1578 = vmatpush1.msra.mxu0 0.0
    %1579 = vmatprep.subr.mxu0 0.0
    %1580 = vmatpush1.msra.mxu0 0.0
    %1581 = vmatprep.subr.mxu0 0.0
    %1582 = vmatpush1.msra.mxu0 0.0
    %1583 = vmatprep.subr.mxu0 0.0
    %1584 = vmatpush1.msra.mxu0 0.0
    %1585 = vmatprep.subr.mxu0 0.0
    %1586 = vmatpush1.msra.mxu0 0.0
    %1587 = vmatprep.subr.mxu0 0.0
    %1588 = vmatpush1.msra.mxu0 0.0
    %1589 = vmatprep.subr.mxu0 0.0
    %1590 = vmatpush1.msra.mxu0 0.0
    %1591 = vmatprep.subr.mxu0 0.0
    %1592 = vmatpush1.msra.mxu0 0.0
    %1593 = vmatprep.subr.mxu0 0.0
    %1594 = vmatpush1.msra.mxu0 0.0
    %1595 = vmatprep.subr.mxu0 0.0
    %1596 = vmatpush1.msra.mxu0 0.0
    %1597 = vmatprep.subr.mxu0 0.0
    %1598 = vmatpush1.msra.mxu0 0.0
    %1599 = vmatprep.subr.mxu0 0.0
    %1600 = vmatpush1.msra.mxu0 0.0
    %1601 = vmatprep.subr.mxu0 0.0
    %1602 = vmatpush1.msra.mxu0 0.0
    %1603 = vmatprep.subr.mxu0 0.0
    %1604 = vmatpush1.msra.mxu0 0.0
    %1605 = vmatprep.subr.mxu0 0.0
    %1606 = vmatpush1.msra.mxu0 0.0
    %1607 = vmatprep.subr.mxu0 0.0
    %1608 = vmatpush1.msra.mxu0 0.0
    %1609 = vmatprep.subr.mxu0 0.0
    %1610 = vmatpush1.msra.mxu0 0.0
    %1611 = vmatprep.subr.mxu0 0.0
    %1612 = vmatpush1.msra.mxu0 0.0
    %1613 = vmatprep.subr.mxu0 0.0
    %1614 = vmatpush1.msra.mxu0 0.0
    %1615 = vmatprep.mubr.f32.mxu0 0.0
    %v1616 = vand.u32 %v1371, 4294901760
    %v1617 = vsub.f32 %v1371, %v1616
    %1618 = vmatmul.mubr.f32.gmra.mrb[0].mxu0 %v1617
    %v1619 = vpop.f32.mrb[0].mxu0
    %v1620 = vadd.f32 %v1540, %v1619
    %v1621 = vpop.f32.mrb[0].mxu0
    %1622 = vdwg.mxu0
    %1623 = vmatprep.subr.mxu0 0.0
    %v1624 = vand.u32 %v1358, 4294901760
    %1625 = vmatpush1.msra.mxu0 %v1624
    %1626 = vmatprep.subr.mxu0 0.0
    %v1627 = vand.u32 %v1359, 4294901760
    %1628 = vmatpush1.msra.mxu0 %v1627
    %1629 = vmatprep.subr.mxu0 0.0
    %v1630 = vand.u32 %v1360, 4294901760
    %1631 = vmatpush1.msra.mxu0 %v1630
    %1632 = vmatprep.subr.mxu0 0.0
    %v1633 = vand.u32 %v1361, 4294901760
    %1634 = vmatpush1.msra.mxu0 %v1633
    %1635 = vmatprep.subr.mxu0 0.0
    %1636 = vmatpush1.msra.mxu0 0.0
    %1637 = vmatprep.subr.mxu0 0.0
    %1638 = vmatpush1.msra.mxu0 0.0
    %1639 = vmatprep.subr.mxu0 0.0
    %1640 = vmatpush1.msra.mxu0 0.0
    %1641 = vmatprep.subr.mxu0 0.0
    %1642 = vmatpush1.msra.mxu0 0.0
    %1643 = vmatprep.subr.mxu0 0.0
    %1644 = vmatpush1.msra.mxu0 0.0
    %1645 = vmatprep.subr.mxu0 0.0
    %1646 = vmatpush1.msra.mxu0 0.0
    %1647 = vmatprep.subr.mxu0 0.0
    %1648 = vmatpush1.msra.mxu0 0.0
    %1649 = vmatprep.subr.mxu0 0.0
    %1650 = vmatpush1.msra.mxu0 0.0
    %1651 = vmatprep.subr.mxu0 0.0
    %1652 = vmatpush1.msra.mxu0 0.0
    %1653 = vmatprep.subr.mxu0 0.0
    %1654 = vmatpush1.msra.mxu0 0.0
    %1655 = vmatprep.subr.mxu0 0.0
    %1656 = vmatpush1.msra.mxu0 0.0
    %1657 = vmatprep.subr.mxu0 0.0
    %1658 = vmatpush1.msra.mxu0 0.0
    %1659 = vmatprep.subr.mxu0 0.0
    %1660 = vmatpush1.msra.mxu0 0.0
    %1661 = vmatprep.subr.mxu0 0.0
    %1662 = vmatpush1.msra.mxu0 0.0
    %1663 = vmatprep.subr.mxu0 0.0
    %1664 = vmatpush1.msra.mxu0 0.0
    %1665 = vmatprep.subr.mxu0 0.0
    %1666 = vmatpush1.msra.mxu0 0.0
    %1667 = vmatprep.subr.mxu0 0.0
    %1668 = vmatpush1.msra.mxu0 0.0
    %1669 = vmatprep.subr.mxu0 0.0
    %1670 = vmatpush1.msra.mxu0 0.0
    %1671 = vmatprep.subr.mxu0 0.0
    %1672 = vmatpush1.msra.mxu0 0.0
    %1673 = vmatprep.subr.mxu0 0.0
    %1674 = vmatpush1.msra.mxu0 0.0
    %1675 = vmatprep.subr.mxu0 0.0
    %1676 = vmatpush1.msra.mxu0 0.0
    %1677 = vmatprep.subr.mxu0 0.0
    %1678 = vmatpush1.msra.mxu0 0.0
    %1679 = vmatprep.subr.mxu0 0.0
    %1680 = vmatpush1.msra.mxu0 0.0
    %1681 = vmatprep.subr.mxu0 0.0
    %1682 = vmatpush1.msra.mxu0 0.0
    %1683 = vmatprep.subr.mxu0 0.0
    %1684 = vmatpush1.msra.mxu0 0.0
    %1685 = vmatprep.subr.mxu0 0.0
    %1686 = vmatpush1.msra.mxu0 0.0
    %1687 = vmatprep.subr.mxu0 0.0
    %1688 = vmatpush1.msra.mxu0 0.0
    %1689 = vmatprep.subr.mxu0 0.0
    %1690 = vmatpush1.msra.mxu0 0.0
    %1691 = vmatprep.mubr.f32.mxu0 0.0
    %v1692 = vand.u32 %v1371, 4294901760
    %v1693 = vsub.f32 %v1371, %v1692
    %v1694 = vand.u32 %v1693, 4294901760
    %1695 = vmatmul.mubr.f32.gmra.mrb[0].mxu0 %v1694
    %v1696 = vpop.f32.mrb[0].mxu0
    %v1697 = vadd.f32 %v1620, %v1696
    %v1698 = vpop.f32.mrb[0].mxu0
    %1699 = vdwg.mxu0
    %1700 = vmatprep.subr.mxu0 0.0
    %v1701 = vand.u32 %v1358, 4294901760
    %v1702 = vsub.f32 %v1358, %v1701
    %v1703 = vand.u32 %v1702, 4294901760
    %1704 = vmatpush1.msra.mxu0 %v1703
    %1705 = vmatprep.subr.mxu0 0.0
    %v1706 = vand.u32 %v1359, 4294901760
    %v1707 = vsub.f32 %v1359, %v1706
    %v1708 = vand.u32 %v1707, 4294901760
    %1709 = vmatpush1.msra.mxu0 %v1708
    %1710 = vmatprep.subr.mxu0 0.0
    %v1711 = vand.u32 %v1360, 4294901760
    %v1712 = vsub.f32 %v1360, %v1711
    %v1713 = vand.u32 %v1712, 4294901760
    %1714 = vmatpush1.msra.mxu0 %v1713
    %1715 = vmatprep.subr.mxu0 0.0
    %v1716 = vand.u32 %v1361, 4294901760
    %v1717 = vsub.f32 %v1361, %v1716
    %v1718 = vand.u32 %v1717, 4294901760
    %1719 = vmatpush1.msra.mxu0 %v1718
    %1720 = vmatprep.subr.mxu0 0.0
    %1721 = vmatpush1.msra.mxu0 0.0
    %1722 = vmatprep.subr.mxu0 0.0
    %1723 = vmatpush1.msra.mxu0 0.0
    %1724 = vmatprep.subr.mxu0 0.0
    %1725 = vmatpush1.msra.mxu0 0.0
    %1726 = vmatprep.subr.mxu0 0.0
    %1727 = vmatpush1.msra.mxu0 0.0
    %1728 = vmatprep.subr.mxu0 0.0
    %1729 = vmatpush1.msra.mxu0 0.0
    %1730 = vmatprep.subr.mxu0 0.0
    %1731 = vmatpush1.msra.mxu0 0.0
    %1732 = vmatprep.subr.mxu0 0.0
    %1733 = vmatpush1.msra.mxu0 0.0
    %1734 = vmatprep.subr.mxu0 0.0
    %1735 = vmatpush1.msra.mxu0 0.0
    %1736 = vmatprep.subr.mxu0 0.0
    %1737 = vmatpush1.msra.mxu0 0.0
    %1738 = vmatprep.subr.mxu0 0.0
    %1739 = vmatpush1.msra.mxu0 0.0
    %1740 = vmatprep.subr.mxu0 0.0
    %1741 = vmatpush1.msra.mxu0 0.0
    %1742 = vmatprep.subr.mxu0 0.0
    %1743 = vmatpush1.msra.mxu0 0.0
    %1744 = vmatprep.subr.mxu0 0.0
    %1745 = vmatpush1.msra.mxu0 0.0
    %1746 = vmatprep.subr.mxu0 0.0
    %1747 = vmatpush1.msra.mxu0 0.0
    %1748 = vmatprep.subr.mxu0 0.0
    %1749 = vmatpush1.msra.mxu0 0.0
    %1750 = vmatprep.subr.mxu0 0.0
    %1751 = vmatpush1.msra.mxu0 0.0
    %1752 = vmatprep.subr.mxu0 0.0
    %1753 = vmatpush1.msra.mxu0 0.0
    %1754 = vmatprep.subr.mxu0 0.0
    %1755 = vmatpush1.msra.mxu0 0.0
    %1756 = vmatprep.subr.mxu0 0.0
    %1757 = vmatpush1.msra.mxu0 0.0
    %1758 = vmatprep.subr.mxu0 0.0
    %1759 = vmatpush1.msra.mxu0 0.0
    %1760 = vmatprep.subr.mxu0 0.0
    %1761 = vmatpush1.msra.mxu0 0.0
    %1762 = vmatprep.subr.mxu0 0.0
    %1763 = vmatpush1.msra.mxu0 0.0
    %1764 = vmatprep.subr.mxu0 0.0
    %1765 = vmatpush1.msra.mxu0 0.0
    %1766 = vmatprep.subr.mxu0 0.0
    %1767 = vmatpush1.msra.mxu0 0.0
    %1768 = vmatprep.subr.mxu0 0.0
    %1769 = vmatpush1.msra.mxu0 0.0
    %1770 = vmatprep.subr.mxu0 0.0
    %1771 = vmatpush1.msra.mxu0 0.0
    %1772 = vmatprep.subr.mxu0 0.0
    %1773 = vmatpush1.msra.mxu0 0.0
    %1774 = vmatprep.subr.mxu0 0.0
    %1775 = vmatpush1.msra.mxu0 0.0
    %1776 = vmatprep.mubr.f32.mxu0 0.0
    %v1777 = vand.u32 %v1371, 4294901760
    %1778 = vmatmul.mubr.f32.gmra.mrb[0].mxu0 %v1777
    %v1779 = vpop.f32.mrb[0].mxu0
    %v1780 = vadd.f32 %v1697, %v1779
    %v1781 = vpop.f32.mrb[0].mxu0
    %1782 = vdwg.mxu0
    %1783 = vmatprep.subr.mxu0 0.0
    %v1784 = vand.u32 %v1358, 4294901760
    %1785 = vmatpush1.msra.mxu0 %v1784
    %1786 = vmatprep.subr.mxu0 0.0
    %v1787 = vand.u32 %v1359, 4294901760
    %1788 = vmatpush1.msra.mxu0 %v1787
    %1789 = vmatprep.subr.mxu0 0.0
    %v1790 = vand.u32 %v1360, 4294901760
    %1791 = vmatpush1.msra.mxu0 %v1790
    %1792 = vmatprep.subr.mxu0 0.0
    %v1793 = vand.u32 %v1361, 4294901760
    %1794 = vmatpush1.msra.mxu0 %v1793
    %1795 = vmatprep.subr.mxu0 0.0
    %1796 = vmatpush1.msra.mxu0 0.0
    %1797 = vmatprep.subr.mxu0 0.0
    %1798 = vmatpush1.msra.mxu0 0.0
    %1799 = vmatprep.subr.mxu0 0.0
    %1800 = vmatpush1.msra.mxu0 0.0
    %1801 = vmatprep.subr.mxu0 0.0
    %1802 = vmatpush1.msra.mxu0 0.0
    %1803 = vmatprep.subr.mxu0 0.0
    %1804 = vmatpush1.msra.mxu0 0.0
    %1805 = vmatprep.subr.mxu0 0.0
    %1806 = vmatpush1.msra.mxu0 0.0
    %1807 = vmatprep.subr.mxu0 0.0
    %1808 = vmatpush1.msra.mxu0 0.0
    %1809 = vmatprep.subr.mxu0 0.0
    %1810 = vmatpush1.msra.mxu0 0.0
    %1811 = vmatprep.subr.mxu0 0.0
    %1812 = vmatpush1.msra.mxu0 0.0
    %1813 = vmatprep.subr.mxu0 0.0
    %1814 = vmatpush1.msra.mxu0 0.0
    %1815 = vmatprep.subr.mxu0 0.0
    %1816 = vmatpush1.msra.mxu0 0.0
    %1817 = vmatprep.subr.mxu0 0.0
    %1818 = vmatpush1.msra.mxu0 0.0
    %1819 = vmatprep.subr.mxu0 0.0
    %1820 = vmatpush1.msra.mxu0 0.0
    %1821 = vmatprep.subr.mxu0 0.0
    %1822 = vmatpush1.msra.mxu0 0.0
    %1823 = vmatprep.subr.mxu0 0.0
    %1824 = vmatpush1.msra.mxu0 0.0
    %1825 = vmatprep.subr.mxu0 0.0
    %1826 = vmatpush1.msra.mxu0 0.0
    %1827 = vmatprep.subr.mxu0 0.0
    %1828 = vmatpush1.msra.mxu0 0.0
    %1829 = vmatprep.subr.mxu0 0.0
    %1830 = vmatpush1.msra.mxu0 0.0
    %1831 = vmatprep.subr.mxu0 0.0
    %1832 = vmatpush1.msra.mxu0 0.0
    %1833 = vmatprep.subr.mxu0 0.0
    %1834 = vmatpush1.msra.mxu0 0.0
    %1835 = vmatprep.subr.mxu0 0.0
    %1836 = vmatpush1.msra.mxu0 0.0
    %1837 = vmatprep.subr.mxu0 0.0
    %1838 = vmatpush1.msra.mxu0 0.0
    %1839 = vmatprep.subr.mxu0 0.0
    %1840 = vmatpush1.msra.mxu0 0.0
    %1841 = vmatprep.subr.mxu0 0.0
    %1842 = vmatpush1.msra.mxu0 0.0
    %1843 = vmatprep.subr.mxu0 0.0
    %1844 = vmatpush1.msra.mxu0 0.0
    %1845 = vmatprep.subr.mxu0 0.0
    %1846 = vmatpush1.msra.mxu0 0.0
    %1847 = vmatprep.subr.mxu0 0.0
    %1848 = vmatpush1.msra.mxu0 0.0
    %1849 = vmatprep.subr.mxu0 0.0
    %1850 = vmatpush1.msra.mxu0 0.0
    %1851 = vmatprep.mubr.f32.mxu0 0.0
    %v1852 = vand.u32 %v1371, 4294901760
    %1853 = vmatmul.mubr.f32.gmra.mrb[0].mxu0 %v1852
    %v1854 = vpop.f32.mrb[0].mxu0
    %v1855 = vadd.f32 %v1780, %v1854
    %v1856 = vpop.f32.mrb[0].mxu0
    %1857 = vdwg.mxu0
    %vm1858 = vcmask 64512
    %1859 = vst.msk [vmem:[#allocation2] sm:$0xff] %vm1858, %v1855
    // Predicated region
    $region30: #{m6_pallas.1} parent=1 // pred_check
      _
    $region31: #{m6_pallas.1} parent=1 // pred_check_branch
      %1861 = sbr.rel (0) target = $region33
    $region32: #{m6_pallas.1} parent=1 // pred_region
      %s1863 = ssub.s32 128, 32
      %1864 = vsyncadd [#allocation3], %s1863
      %s1865 = sshll.u32 [#allocation2], 4
      %s1866 = int_to_ptr.vmem [resolvable:$true] %s1865
      %1871 = dma.vmem_to_hbm [thread:$0]  %s1866, 32, %s7, [#allocation3], 32, 32, 2
    $region33: #{m6_pallas.1} parent=1 // pred_fallthru
      _
    // Predicated region
    $region34: #{m6_pallas.1} parent=1 // pred_check
      _
    $region35: #{m6_pallas.1} parent=1 // pred_check_branch
      %1873 = sbr.rel (0) target = $region37
    $region36: #{m6_pallas.1} parent=1 // pred_region
      %1874 = dma.done [#allocation3], 128
    $region37: #{m6_pallas.1} parent=1 // pred_fallthru
      _
    %1875 = vsyncpa [#allocation3], 1

</llo_original>
